<compile_context>
chip_gen: v7x
topology: tpu7x:2x2x1
jax: 0.10.0
libtpu: 0.0.40
codegen_flags: <defaults>
</compile_context>

<pallas_src>
import functools

import jax
import jax.numpy as jnp
from jax import lax
from jax.experimental import pallas as pl
from jax.experimental.pallas import tpu as pltpu

# Finite stand-in for -inf: exp(score + bias - m) underflows to exactly 0 for
# masked keys while keeping all arithmetic finite (no NaN/Inf in the online
# softmax).  A query row whose keys are ALL masked yields the uniform average
# of V instead of the reference's NaN (degenerate padding case).
_MASK_VALUE = -1e30
_LANE = 128


def _full_attention_kernel(flags_ref, q_ref, k_ref, v_ref, kvb_ref, o_ref,
                           qs_sc, m_sc, l_sc, acc_sc,
                           *, num_heads, head_dim, scale, num_s_tiles):
    """One (batch, L-tile, S-tile) grid step; all heads handled inside.

    flags_ref: SMEM int32 [N*num_s_tiles], 1 iff that KV tile has masked keys
    q_ref:   (1, tq, H*D)      k_ref / v_ref: (1, tk, H*D)
    kvb_ref: (1, 1, tk)        additive kv-mask bias (0 valid / -1e30 masked)
    o_ref:   (1, tq, H*D)      lane-dense output slab
    scratch: qs_sc (tq, H*D) bf16  scaled Q (written once per L tile)
             m_sc  (H, tq, 1) f32  running max
             l_sc  (tq, H*D)  f32  running denominator (broadcast over D lanes)
             acc_sc(tq, H*D)  f32  running numerator
    """
    n = pl.program_id(0)
    si = pl.program_id(2)

    @pl.when(si == 0)
    def _init():
        # Hoisted per-L-tile Q prep: temperature folded in, one bf16 cast,
        # reused for every S tile.
        qs_sc[...] = (q_ref[0] * scale).astype(qs_sc.dtype)
        m_sc[...] = jnp.full_like(m_sc, -jnp.inf)
        l_sc[...] = jnp.zeros_like(l_sc)
        acc_sc[...] = jnp.zeros_like(acc_sc)

    # bf16 operands for the MXU (no-ops when the inputs are already bf16).
    k = k_ref[0].astype(jnp.bfloat16)            # (tk, H*D)
    v = v_ref[0].astype(jnp.bfloat16)            # (tk, H*D)

    def _make_body(apply_bias):
        def body():
            kv_bias = kvb_ref[0] if apply_bias else None      # (1, tk) f32
            for h in range(num_heads):                        # static unroll
                sl = slice(h * head_dim, (h + 1) * head_dim)
                # Q @ K^T without materializing a transpose.
                s = lax.dot_general(qs_sc[:, sl], k[:, sl],
                                    (((1,), (1,)), ((), ())),
                                    preferred_element_type=jnp.float32)  # (tq, tk)
                if apply_bias:
                    s = s + kv_bias
                # Online softmax update.
                m_prev = m_sc[h]                                          # (tq, 1)
                m_new = jnp.maximum(m_prev, jnp.max(s, axis=-1, keepdims=True))
                alpha = jnp.exp(m_prev - m_new)                           # (tq, 1)
                p = jnp.exp(s - m_new)                                    # (tq, tk)
                l_sc[:, sl] = alpha * l_sc[:, sl] + jnp.sum(p, axis=-1, keepdims=True)
                pv = lax.dot_general(p.astype(jnp.bfloat16), v[:, sl],
                                     (((1,), (0,)), ((), ())),
                                     preferred_element_type=jnp.float32)  # (tq, D)
                acc_sc[:, sl] = alpha * acc_sc[:, sl] + pv
                m_sc[h] = m_new
        return body

    # Fast path for fully-valid KV tiles: skip all masking work.
    needs_mask = flags_ref[n * num_s_tiles + si] != 0
    pl.when(needs_mask)(_make_body(True))
    pl.when(jnp.logical_not(needs_mask))(_make_body(False))

    @pl.when(si == pl.num_programs(2) - 1)
    def _finalize():
        # Single fused multiply + cast + full-width (tq, H*D) store.
        inv_l = pl.reciprocal(l_sc[...], approx=True)          # EUP reciprocal
        o_ref[0] = (acc_sc[...] * inv_l).astype(o_ref.dtype)


def _round_up(x, m):
    return (x + m - 1) // m * m


def _vmem_budget_bytes():
    cap = None
    try:
        cap = getattr(pltpu.get_tpu_info(), "vmem_capacity_bytes", None)
    except Exception:
        cap = None
    if not cap:
        cap = 64 * 1024 * 1024          # conservative: v7x per-TensorCore VMEM
    return int(cap) * 3 // 4            # headroom for compiler temporaries


def _is_v5e():
    try:
        kind = jax.devices()[0].device_kind.lower()
        return ("v5 lite" in kind) or ("v5e" in kind)
    except Exception:
        return False


def _footprint_bytes(tq, tk, hd, h, in_isz, out_isz):
    # Double-buffered pipeline blocks + persistent scratch + score temporaries.
    blocks = 2 * (tq * hd * in_isz             # Q
                  + 2 * tk * hd * in_isz       # K + V
                  + tq * hd * out_isz          # out
                  + max(tk, _LANE) * 4)        # kv-bias row
    scratch = (tq * hd * 2                     # scaled Q (bf16)
               + h * tq * _LANE * 4            # running max (lane-padded)
               + 2 * tq * hd * 4)              # denominator + numerator
    temps = 4 * tq * tk * 4                    # score / prob working set (f32)
    return blocks + scratch + temps


def _select_tiles(batch, seq_l, seq_s, hd, h, in_isz, out_isz, budget):
    # L tile.
    if seq_l <= _LANE:
        tq = _round_up(seq_l, 8)
    else:
        tq = 512 if seq_l >= 512 else (256 if seq_l >= 256 else 128)
        # Keep >= 2 parallel grid steps so dual-TensorCore chips (v7x) get work.
        while batch * pl.cdiv(seq_l, tq) < 2 and tq > 128:
            tq //= 2
    # S tile.  v5e: smaller score tile (single vst slot, lower HBM bandwidth).
    # TODO(synk): on v5e, consider pipeline_mode=pl.Buffered(3) for K/V if
    # profiling shows exposed DMA.
    max_tk = 256 if _is_v5e() else 1024
    if seq_s <= _LANE:
        tk = _round_up(seq_s, 8)
    else:
        cands = [c for c in (1024, 512, 256, 128) if c <= max_tk]
        tk = next((c for c in cands if c <= seq_s), cands[-1])
    # Shrink until the per-step footprint fits the VMEM budget.
    while _footprint_bytes(tq, tk, hd, h, in_isz, out_isz) > budget and tk > 128:
        tk //= 2
    while _footprint_bytes(tq, tk, hd, h, in_isz, out_isz) > budget and tq > 128:
        tq //= 2
    return tq, tk


def full_attention(queries, keys, values, q_mask=None, kv_mask=None,
                   use_dropout=False, attention_dropout=0.1):
    """queries [N,L,H,D], keys/values [N,S,H,D], masks [N,L]/[N,S] -> [N,L,H,D]."""
    # TODO(synk): attention dropout (use_dropout=True) not implemented; the
    # module defaults to use_dropout=False (eval semantics).
    del use_dropout, attention_dropout
    # q_mask is intentionally unused: softmax is shift-invariant per query row,
    # so a per-row additive mask cannot change the output.  (The reference
    # produces NaN for fully q-masked rows; we return a finite softmax.)
    del q_mask

    N, L, H, D = queries.shape
    S = keys.shape[1]
    HD = H * D
    scale = 1.0 / (D ** 0.5)

    in_isz = jnp.dtype(queries.dtype).itemsize
    out_isz = in_isz
    budget = _vmem_budget_bytes()
    tq, tk = _select_tiles(N, L, S, HD, H, in_isz, out_isz, budget)
    L_pad = _round_up(L, tq)
    S_pad = _round_up(S, tk)
    num_l_tiles = L_pad // tq
    num_s_tiles = S_pad // tk
    footprint = _footprint_bytes(tq, tk, HD, H, in_isz, out_isz)
    vmem_limit = int(min(budget, max(48 * 1024 * 1024, 2 * footprint)))

    # Contiguous trailing-dim merges: free reshapes, no transposes, no casts.
    q_flat = queries.reshape(N, L, HD)
    k_flat = keys.reshape(N, S, HD)
    v_flat = values.reshape(N, S, HD)
    if L_pad != L:
        q_flat = jnp.pad(q_flat, ((0, 0), (0, L_pad - L), (0, 0)))
    if S_pad != S:
        k_flat = jnp.pad(k_flat, ((0, 0), (0, S_pad - S), (0, 0)))
        v_flat = jnp.pad(v_flat, ((0, 0), (0, S_pad - S), (0, 0)))

    # Key-side validity (user mask AND non-padded); padded keys are masked out.
    kv_valid = kv_mask.astype(bool) if kv_mask is not None else jnp.ones((N, S), bool)
    if S_pad != S:
        kv_valid = jnp.pad(kv_valid, ((0, 0), (0, S_pad - S)), constant_values=False)

    # Tiny (N,1,S_pad) additive bias + per-(n, S-tile) "has masked keys" flag
    # (scalar-prefetched to SMEM so fully-valid tiles skip all masking work).
    kv_bias = jnp.where(kv_valid, 0.0, _MASK_VALUE).astype(jnp.float32)[:, None, :]
    tile_flags = jnp.any(~kv_valid.reshape(N, num_s_tiles, tk), axis=-1)
    tile_flags = tile_flags.astype(jnp.int32).reshape(N * num_s_tiles)

    kernel = functools.partial(_full_attention_kernel,
                               num_heads=H, head_dim=D, scale=scale,
                               num_s_tiles=num_s_tiles)

    out_flat = pl.pallas_call(
        kernel,
        out_shape=jax.ShapeDtypeStruct((N, L_pad, HD), queries.dtype),
        grid_spec=pltpu.PrefetchScalarGridSpec(
            num_scalar_prefetch=1,
            grid=(N, num_l_tiles, num_s_tiles),        # reduction (S) axis last
            in_specs=[
                pl.BlockSpec((1, tq, HD), lambda n, li, si, flags: (n, li, 0)),
                pl.BlockSpec((1, tk, HD), lambda n, li, si, flags: (n, si, 0)),
                pl.BlockSpec((1, tk, HD), lambda n, li, si, flags: (n, si, 0)),
                pl.BlockSpec((1, 1, tk), lambda n, li, si, flags: (n, 0, si)),
            ],
            out_specs=pl.BlockSpec((1, tq, HD), lambda n, li, si, flags: (n, li, 0)),
            scratch_shapes=[
                pltpu.VMEM((tq, HD), jnp.bfloat16),    # scaled Q
                pltpu.VMEM((H, tq, 1), jnp.float32),   # running max
                pltpu.VMEM((tq, HD), jnp.float32),     # running denominator
                pltpu.VMEM((tq, HD), jnp.float32),     # running numerator
            ],
        ),
        compiler_params=pltpu.CompilerParams(
            dimension_semantics=("parallel", "parallel", "arbitrary"),
            vmem_limit_bytes=vmem_limit,
        ),
    )(tile_flags, q_flat, k_flat, v_flat, kv_bias)

    out = out_flat[:, :L, :] if L_pad != L else out_flat
    return out.reshape(N, L, H, D)


def _reference(queries, keys, values, q_mask=None, kv_mask=None):
    D = queries.shape[3]
    qk = jnp.einsum('nlhd,nshd->nlsh', queries, keys)
    if kv_mask is not None:
        qm = q_mask if q_mask is not None else jnp.ones(queries.shape[:2], dtype=bool)
        valid = qm[:, :, None, None] & kv_mask[:, None, :, None]
        qk = jnp.where(valid, qk, -jnp.inf)
    a = jax.nn.softmax(qk / (D ** 0.5), axis=2)
    return jnp.einsum('nlsh,nshd->nlhd', a, values)


if __name__ == "__main__":
    key = jax.random.PRNGKey(0)
    k1, k2, k3, k4, k5, k6, k7, k8, k9 = jax.random.split(key, 9)

    # Tolerance covers bf16 MXU operands + the EUP approximate reciprocal;
    # structural bugs would produce O(0.1-1) deviations.
    ATOL = RTOL = 2e-2

    # --- small shape typical of the module ----------------------------------
    N, L, S, H, D = 2, 8, 8, 4, 32
    queries = jax.random.normal(k1, (N, L, H, D), dtype=jnp.float32)
    keys = jax.random.normal(k2, (N, S, H, D), dtype=jnp.float32)
    values = jax.random.normal(k3, (N, S, H, D), dtype=jnp.float32)
    q_mask = jnp.ones((N, L), dtype=bool)
    kv_mask = jnp.ones((N, S), dtype=bool).at[1, S - 2:].set(False)

    out = jax.block_until_ready(full_attention(queries, keys, values, q_mask, kv_mask))
    ref = _reference(queries, keys, values, q_mask, kv_mask)
    assert out.shape == (N, L, H, D)
    assert jnp.allclose(out, ref, atol=ATOL, rtol=RTOL)

    # no-mask path (flags all zero -> fast branch only)
    out2 = jax.block_until_ready(full_attention(queries, keys, values))
    ref2 = _reference(queries, keys, values)
    assert jnp.allclose(out2, ref2, atol=ATOL, rtol=RTOL)

    # --- modest shape that exercises L/S tiling + online softmax -------------
    N2, L2, S2, H2, D2 = 2, 512, 1024, 2, 64
    q_b = jax.random.normal(k4, (N2, L2, H2, D2), dtype=jnp.float32)
    k_b = jax.random.normal(k5, (N2, S2, H2, D2), dtype=jnp.float32)
    v_b = jax.random.normal(k6, (N2, S2, H2, D2), dtype=jnp.float32)
    qm_b = jnp.ones((N2, L2), dtype=bool)
    kvm_b = jnp.ones((N2, S2), dtype=bool).at[1, 700:].set(False)

    out3 = jax.block_until_ready(full_attention(q_b, k_b, v_b, qm_b, kvm_b))
    ref3 = _reference(q_b, k_b, v_b, qm_b, kvm_b)
    assert out3.shape == (N2, L2, H2, D2)
    assert jnp.allclose(out3, ref3, atol=ATOL, rtol=RTOL)

    # --- ragged shape: exercises L/S padding (padded keys masked in-kernel) --
    N3, L3, S3, H3, D3 = 1, 200, 333, 2, 64
    q_r = jax.random.normal(k7, (N3, L3, H3, D3), dtype=jnp.float32)
    k_r = jax.random.normal(k8, (N3, S3, H3, D3), dtype=jnp.float32)
    v_r = jax.random.normal(k9, (N3, S3, H3, D3), dtype=jnp.float32)

    out4 = jax.block_until_ready(full_attention(q_r, k_r, v_r))
    ref4 = _reference(q_r, k_r, v_r)
    assert out4.shape == (N3, L3, H3, D3)
    assert jnp.allclose(out4, ref4, atol=ATOL, rtol=RTOL)

    print("KERNEL_OK")
</pallas_src>

<mosaic_0001>
module attributes {stable_mosaic.version = 11 : i64} {
  func.func @_full_attention_kernel(%arg0: i32, %arg1: i32, %arg2: i32, %arg3: memref<2xi32, #tpu.memory_space<smem>>, %arg4: memref<1x8x128xf32, #tpu.memory_space<vmem>>, %arg5: memref<1x8x128xf32, #tpu.memory_space<vmem>>, %arg6: memref<1x8x128xf32, #tpu.memory_space<vmem>>, %arg7: memref<1x1x8xf32, #tpu.memory_space<vmem>>, %arg8: memref<1x8x128xf32, #tpu.memory_space<vmem>>, %arg9: memref<8x128xbf16, #tpu.memory_space<vmem>>, %arg10: memref<4x8x1xf32, #tpu.memory_space<vmem>>, %arg11: memref<8x128xf32, #tpu.memory_space<vmem>>, %arg12: memref<8x128xf32, #tpu.memory_space<vmem>>) attributes {dimension_semantics = [#tpu.dimension_semantics<parallel>, #tpu.dimension_semantics<parallel>, #tpu.dimension_semantics<arbitrary>], iteration_bounds = array<i64: 2, 1, 1>, scalar_prefetch = 1 : i64, scratch_operands = 4 : i64, tpu.core_type = #tpu.core_type<tc>, window_params = [{transform_indices = @transform_0, window_bounds = array<i64: 1, 8, 128>}, {transform_indices = @transform_1, window_bounds = array<i64: 1, 8, 128>}, {transform_indices = @transform_2, window_bounds = array<i64: 1, 8, 128>}, {transform_indices = @transform_3, window_bounds = array<i64: 1, 1, 8>}, {transform_indices = @transform_4, window_bounds = array<i64: 1, 8, 128>}]} {
    %c0_i32 = arith.constant 0 : i32
    %0 = arith.cmpi eq, %arg2, %c0_i32 : i32
    %1 = arith.extui %0 : i1 to i32
    %c0_i32_0 = arith.constant 0 : i32
    %2 = arith.cmpi ne, %1, %c0_i32_0 : i32
    scf.if %2 {
      %c0_11 = arith.constant 0 : index
      %c0_12 = arith.constant 0 : index
      %c0_13 = arith.constant 0 : index
      %22 = vector.load %arg4[%c0_11, %c0_12, %c0_13] : memref<1x8x128xf32, #tpu.memory_space<vmem>>, vector<1x8x128xf32>
      %23 = vector.shape_cast %22 : vector<1x8x128xf32> to vector<8x128xf32>
      %cst = arith.constant 0.176776692 : f32
      %24 = vector.broadcast %cst : f32 to vector<8x128xf32>
      %25 = arith.mulf %23, %24 : vector<8x128xf32>
      %26 = arith.truncf %25 : vector<8x128xf32> to vector<8x128xbf16>
      %c0_14 = arith.constant 0 : index
      %c0_15 = arith.constant 0 : index
      %27 = vector.load %arg9[%c0_14, %c0_15] : memref<8x128xbf16, #tpu.memory_space<vmem>>, vector<8x128xbf16>
      tpu.vector_store %arg9[%c0_14, %c0_15], %26 {strides = array<i32>} : memref<8x128xbf16, #tpu.memory_space<vmem>>, vector<8x128xbf16>,
      %cst_16 = arith.constant 0xFF800000 : f32
      %28 = vector.broadcast %cst_16 : f32 to vector<4x8x1xf32>
      %c0_17 = arith.constant 0 : index
      %c0_18 = arith.constant 0 : index
      %c0_19 = arith.constant 0 : index
      %29 = vector.load %arg10[%c0_17, %c0_18, %c0_19] : memref<4x8x1xf32, #tpu.memory_space<vmem>>, vector<4x8x1xf32>
      tpu.vector_store %arg10[%c0_17, %c0_18, %c0_19], %28 {strides = array<i32>} : memref<4x8x1xf32, #tpu.memory_space<vmem>>, vector<4x8x1xf32>,
      %cst_20 = arith.constant 0.000000e+00 : f32
      %30 = vector.broadcast %cst_20 : f32 to vector<8x128xf32>
      %c0_21 = arith.constant 0 : index
      %c0_22 = arith.constant 0 : index
      %31 = vector.load %arg11[%c0_21, %c0_22] : memref<8x128xf32, #tpu.memory_space<vmem>>, vector<8x128xf32>
      tpu.vector_store %arg11[%c0_21, %c0_22], %30 {strides = array<i32>} : memref<8x128xf32, #tpu.memory_space<vmem>>, vector<8x128xf32>,
      %cst_23 = arith.constant 0.000000e+00 : f32
      %32 = vector.broadcast %cst_23 : f32 to vector<8x128xf32>
      %c0_24 = arith.constant 0 : index
      %c0_25 = arith.constant 0 : index
      %33 = vector.load %arg12[%c0_24, %c0_25] : memref<8x128xf32, #tpu.memory_space<vmem>>, vector<8x128xf32>
      tpu.vector_store %arg12[%c0_24, %c0_25], %32 {strides = array<i32>} : memref<8x128xf32, #tpu.memory_space<vmem>>, vector<8x128xf32>,
    } else {
    }
    %c0 = arith.constant 0 : index
    %c0_1 = arith.constant 0 : index
    %c0_2 = arith.constant 0 : index
    %3 = vector.load %arg5[%c0, %c0_1, %c0_2] : memref<1x8x128xf32, #tpu.memory_space<vmem>>, vector<1x8x128xf32>
    %4 = vector.shape_cast %3 : vector<1x8x128xf32> to vector<8x128xf32>
    %5 = arith.truncf %4 : vector<8x128xf32> to vector<8x128xbf16>
    %c0_3 = arith.constant 0 : index
    %c0_4 = arith.constant 0 : index
    %c0_5 = arith.constant 0 : index
    %6 = vector.load %arg6[%c0_3, %c0_4, %c0_5] : memref<1x8x128xf32, #tpu.memory_space<vmem>>, vector<1x8x128xf32>
    %7 = vector.shape_cast %6 : vector<1x8x128xf32> to vector<8x128xf32>
    %8 = arith.truncf %7 : vector<8x128xf32> to vector<8x128xbf16>
    %c1_i32 = arith.constant 1 : i32
    %9 = arith.muli %arg0, %c1_i32 : i32
    %10 = arith.addi %9, %arg2 : i32
    %11 = arith.index_cast %10 : i32 to index
    %12 = memref.load %arg3[%11] : memref<2xi32, #tpu.memory_space<smem>>
    %c0_i32_6 = arith.constant 0 : i32
    %13 = arith.cmpi ne, %12, %c0_i32_6 : i32
    %14 = arith.extui %13 : i1 to i32
    %c0_i32_7 = arith.constant 0 : i32
    %15 = arith.cmpi ne, %14, %c0_i32_7 : i32
    scf.if %15 {
      %c0_11 = arith.constant 0 : index
      %c0_12 = arith.constant 0 : index
      %c0_13 = arith.constant 0 : index
      %22 = vector.load %arg7[%c0_11, %c0_12, %c0_13] : memref<1x1x8xf32, #tpu.memory_space<vmem>>, vector<1x1x8xf32>
      %23 = vector.shape_cast %22 : vector<1x1x8xf32> to vector<1x8xf32>
      %c0_14 = arith.constant 0 : index
      %c0_15 = arith.constant 0 : index
      %24 = vector.load %arg9[%c0_14, %c0_15] : memref<8x128xbf16, #tpu.memory_space<vmem>>, vector<8x32xbf16>
      %25 = vector.extract_strided_slice %5 {offsets = [0, 0], sizes = [8, 32], strides = [1, 1]} : vector<8x128xbf16> to vector<8x32xbf16>
      %cst = arith.constant dense<0.000000e+00> : vector<8x8xf32>
      %26 = tpu.matmul %24, %25, %cst {dimension_numbers = #tpu.dot_dimension_numbers<[1], [1], [0], [0], [0, 0, 1, 0], [], []>} : vector<8x32xbf16>, vector<8x32xbf16>, vector<8x8xf32> -> vector<8x8xf32>
      %27 = vector.broadcast %23 : vector<1x8xf32> to vector<8x8xf32>
      %28 = arith.addf %26, %27 : vector<8x8xf32>
      %c0_16 = arith.constant 0 : index
      %c0_17 = arith.constant 0 : index
      %c0_18 = arith.constant 0 : index
      %29 = vector.load %arg10[%c0_16, %c0_17, %c0_18] : memref<4x8x1xf32, #tpu.memory_space<vmem>>, vector<1x8x1xf32>
      %30 = vector.shape_cast %29 : vector<1x8x1xf32> to vector<8x1xf32>
      %cst_19 = arith.constant dense<0xFF800000> : vector<8xf32>
      %31 = vector.multi_reduction <maximumf>, %28, %cst_19 [1] : vector<8x8xf32> to vector<8xf32>
      %32 = vector.shape_cast %31 : vector<8xf32> to vector<8x1xf32>
      %33 = arith.maximumf %30, %32 : vector<8x1xf32>
      %34 = arith.subf %30, %33 : vector<8x1xf32>
      %35 = math.exp %34 : vector<8x1xf32>
      %36 = vector.broadcast %33 : vector<8x1xf32> to vector<8x8xf32>
      %37 = arith.subf %28, %36 : vector<8x8xf32>
      %38 = math.exp %37 : vector<8x8xf32>
      %c0_20 = arith.constant 0 : index
      %c0_21 = arith.constant 0 : index
      %39 = vector.load %arg11[%c0_20, %c0_21] : memref<8x128xf32, #tpu.memory_space<vmem>>, vector<8x32xf32>
      %40 = vector.broadcast %35 : vector<8x1xf32> to vector<8x32xf32>
      %41 = arith.mulf %40, %39 : vector<8x32xf32>
      %cst_22 = arith.constant dense<0.000000e+00> : vector<8xf32>
      %42 = vector.multi_reduction <add>, %38, %cst_22 [1] : vector<8x8xf32> to vector<8xf32>
      %43 = vector.shape_cast %42 : vector<8xf32> to vector<8x1xf32>
      %44 = vector.broadcast %43 : vector<8x1xf32> to vector<8x32xf32>
      %45 = arith.addf %41, %44 : vector<8x32xf32>
      %c0_23 = arith.constant 0 : index
      %c0_24 = arith.constant 0 : index
      %46 = vector.load %arg11[%c0_23, %c0_24] : memref<8x128xf32, #tpu.memory_space<vmem>>, vector<8x32xf32>
      tpu.vector_store %arg11[%c0_23, %c0_24], %45 {strides = array<i32>} : memref<8x128xf32, #tpu.memory_space<vmem>>, vector<8x32xf32>,
      %47 = arith.truncf %38 : vector<8x8xf32> to vector<8x8xbf16>
      %48 = vector.extract_strided_slice %8 {offsets = [0, 0], sizes = [8, 32], strides = [1, 1]} : vector<8x128xbf16> to vector<8x32xbf16>
      %cst_25 = arith.constant dense<0.000000e+00> : vector<8x32xf32>
      %49 = tpu.matmul %47, %48, %cst_25 {dimension_numbers = #tpu.dot_dimension_numbers<[1], [0], [0], [1], [0, 0, 1, 1], [], []>} : vector<8x8xbf16>, vector<8x32xbf16>, vector<8x32xf32> -> vector<8x32xf32>
      %c0_26 = arith.constant 0 : index
      %c0_27 = arith.constant 0 : index
      %50 = vector.load %arg12[%c0_26, %c0_27] : memref<8x128xf32, #tpu.memory_space<vmem>>, vector<8x32xf32>
      %51 = vector.broadcast %35 : vector<8x1xf32> to vector<8x32xf32>
      %52 = arith.mulf %51, %50 : vector<8x32xf32>
      %53 = arith.addf %52, %49 : vector<8x32xf32>
      %c0_28 = arith.constant 0 : index
      %c0_29 = arith.constant 0 : index
      %54 = vector.load %arg12[%c0_28, %c0_29] : memref<8x128xf32, #tpu.memory_space<vmem>>, vector<8x32xf32>
      tpu.vector_store %arg12[%c0_28, %c0_29], %53 {strides = array<i32>} : memref<8x128xf32, #tpu.memory_space<vmem>>, vector<8x32xf32>,
      %c0_30 = arith.constant 0 : index
      %c0_31 = arith.constant 0 : index
      %c0_32 = arith.constant 0 : index
      %55 = vector.load %arg10[%c0_30, %c0_31, %c0_32] : memref<4x8x1xf32, #tpu.memory_space<vmem>>, vector<1x8x1xf32>
      %56 = vector.shape_cast %55 : vector<1x8x1xf32> to vector<8x1xf32>
      %57 = vector.shape_cast %33 : vector<8x1xf32> to vector<1x8x1xf32>
      tpu.vector_store %arg10[%c0_30, %c0_31, %c0_32], %57 {strides = array<i32>} : memref<4x8x1xf32, #tpu.memory_space<vmem>>, vector<1x8x1xf32>,
      %c0_33 = arith.constant 0 : index
      %c32 = arith.constant 32 : index
      %58 = vector.load %arg9[%c0_33, %c32] : memref<8x128xbf16, #tpu.memory_space<vmem>>, vector<8x32xbf16>
      %59 = vector.extract_strided_slice %5 {offsets = [0, 32], sizes = [8, 32], strides = [1, 1]} : vector<8x128xbf16> to vector<8x32xbf16>
      %cst_34 = arith.constant dense<0.000000e+00> : vector<8x8xf32>
      %60 = tpu.matmul %58, %59, %cst_34 {dimension_numbers = #tpu.dot_dimension_numbers<[1], [1], [0], [0], [0, 0, 1, 0], [], []>} : vector<8x32xbf16>, vector<8x32xbf16>, vector<8x8xf32> -> vector<8x8xf32>
      %61 = vector.broadcast %23 : vector<1x8xf32> to vector<8x8xf32>
      %62 = arith.addf %60, %61 : vector<8x8xf32>
      %c1 = arith.constant 1 : index
      %c0_35 = arith.constant 0 : index
      %c0_36 = arith.constant 0 : index
      %63 = vector.load %arg10[%c1, %c0_35, %c0_36] : memref<4x8x1xf32, #tpu.memory_space<vmem>>, vector<1x8x1xf32>
      %64 = vector.shape_cast %63 : vector<1x8x1xf32> to vector<8x1xf32>
      %cst_37 = arith.constant dense<0xFF800000> : vector<8xf32>
      %65 = vector.multi_reduction <maximumf>, %62, %cst_37 [1] : vector<8x8xf32> to vector<8xf32>
      %66 = vector.shape_cast %65 : vector<8xf32> to vector<8x1xf32>
      %67 = arith.maximumf %64, %66 : vector<8x1xf32>
      %68 = arith.subf %64, %67 : vector<8x1xf32>
      %69 = math.exp %68 : vector<8x1xf32>
      %70 = vector.broadcast %67 : vector<8x1xf32> to vector<8x8xf32>
      %71 = arith.subf %62, %70 : vector<8x8xf32>
      %72 = math.exp %71 : vector<8x8xf32>
      %c0_38 = arith.constant 0 : index
      %c32_39 = arith.constant 32 : index
      %73 = vector.load %arg11[%c0_38, %c32_39] : memref<8x128xf32, #tpu.memory_space<vmem>>, vector<8x32xf32>
      %74 = vector.broadcast %69 : vector<8x1xf32> to vector<8x32xf32>
      %75 = arith.mulf %74, %73 : vector<8x32xf32>
      %cst_40 = arith.constant dense<0.000000e+00> : vector<8xf32>
      %76 = vector.multi_reduction <add>, %72, %cst_40 [1] : vector<8x8xf32> to vector<8xf32>
      %77 = vector.shape_cast %76 : vector<8xf32> to vector<8x1xf32>
      %78 = vector.broadcast %77 : vector<8x1xf32> to vector<8x32xf32>
      %79 = arith.addf %75, %78 : vector<8x32xf32>
      %c0_41 = arith.constant 0 : index
      %c32_42 = arith.constant 32 : index
      %80 = vector.load %arg11[%c0_41, %c32_42] : memref<8x128xf32, #tpu.memory_space<vmem>>, vector<8x32xf32>
      tpu.vector_store %arg11[%c0_41, %c32_42], %79 {strides = array<i32>} : memref<8x128xf32, #tpu.memory_space<vmem>>, vector<8x32xf32>,
      %81 = arith.truncf %72 : vector<8x8xf32> to vector<8x8xbf16>
      %82 = vector.extract_strided_slice %8 {offsets = [0, 32], sizes = [8, 32], strides = [1, 1]} : vector<8x128xbf16> to vector<8x32xbf16>
      %cst_43 = arith.constant dense<0.000000e+00> : vector<8x32xf32>
      %83 = tpu.matmul %81, %82, %cst_43 {dimension_numbers = #tpu.dot_dimension_numbers<[1], [0], [0], [1], [0, 0, 1, 1], [], []>} : vector<8x8xbf16>, vector<8x32xbf16>, vector<8x32xf32> -> vector<8x32xf32>
      %c0_44 = arith.constant 0 : index
      %c32_45 = arith.constant 32 : index
      %84 = vector.load %arg12[%c0_44, %c32_45] : memref<8x128xf32, #tpu.memory_space<vmem>>, vector<8x32xf32>
      %85 = vector.broadcast %69 : vector<8x1xf32> to vector<8x32xf32>
      %86 = arith.mulf %85, %84 : vector<8x32xf32>
      %87 = arith.addf %86, %83 : vector<8x32xf32>
      %c0_46 = arith.constant 0 : index
      %c32_47 = arith.constant 32 : index
      %88 = vector.load %arg12[%c0_46, %c32_47] : memref<8x128xf32, #tpu.memory_space<vmem>>, vector<8x32xf32>
      tpu.vector_store %arg12[%c0_46, %c32_47], %87 {strides = array<i32>} : memref<8x128xf32, #tpu.memory_space<vmem>>, vector<8x32xf32>,
      %c1_48 = arith.constant 1 : index
      %c0_49 = arith.constant 0 : index
      %c0_50 = arith.constant 0 : index
      %89 = vector.load %arg10[%c1_48, %c0_49, %c0_50] : memref<4x8x1xf32, #tpu.memory_space<vmem>>, vector<1x8x1xf32>
      %90 = vector.shape_cast %89 : vector<1x8x1xf32> to vector<8x1xf32>
      %91 = vector.shape_cast %67 : vector<8x1xf32> to vector<1x8x1xf32>
      tpu.vector_store %arg10[%c1_48, %c0_49, %c0_50], %91 {strides = array<i32>} : memref<4x8x1xf32, #tpu.memory_space<vmem>>, vector<1x8x1xf32>,
      %c0_51 = arith.constant 0 : index
      %c64 = arith.constant 64 : index
      %92 = vector.load %arg9[%c0_51, %c64] : memref<8x128xbf16, #tpu.memory_space<vmem>>, vector<8x32xbf16>
      %93 = vector.extract_strided_slice %5 {offsets = [0, 64], sizes = [8, 32], strides = [1, 1]} : vector<8x128xbf16> to vector<8x32xbf16>
      %cst_52 = arith.constant dense<0.000000e+00> : vector<8x8xf32>
      %94 = tpu.matmul %92, %93, %cst_52 {dimension_numbers = #tpu.dot_dimension_numbers<[1], [1], [0], [0], [0, 0, 1, 0], [], []>} : vector<8x32xbf16>, vector<8x32xbf16>, vector<8x8xf32> -> vector<8x8xf32>
      %95 = vector.broadcast %23 : vector<1x8xf32> to vector<8x8xf32>
      %96 = arith.addf %94, %95 : vector<8x8xf32>
      %c2 = arith.constant 2 : index
      %c0_53 = arith.constant 0 : index
      %c0_54 = arith.constant 0 : index
      %97 = vector.load %arg10[%c2, %c0_53, %c0_54] : memref<4x8x1xf32, #tpu.memory_space<vmem>>, vector<1x8x1xf32>
      %98 = vector.shape_cast %97 : vector<1x8x1xf32> to vector<8x1xf32>
      %cst_55 = arith.constant dense<0xFF800000> : vector<8xf32>
      %99 = vector.multi_reduction <maximumf>, %96, %cst_55 [1] : vector<8x8xf32> to vector<8xf32>
      %100 = vector.shape_cast %99 : vector<8xf32> to vector<8x1xf32>
      %101 = arith.maximumf %98, %100 : vector<8x1xf32>
      %102 = arith.subf %98, %101 : vector<8x1xf32>
      %103 = math.exp %102 : vector<8x1xf32>
      %104 = vector.broadcast %101 : vector<8x1xf32> to vector<8x8xf32>
      %105 = arith.subf %96, %104 : vector<8x8xf32>
      %106 = math.exp %105 : vector<8x8xf32>
      %c0_56 = arith.constant 0 : index
      %c64_57 = arith.constant 64 : index
      %107 = vector.load %arg11[%c0_56, %c64_57] : memref<8x128xf32, #tpu.memory_space<vmem>>, vector<8x32xf32>
      %108 = vector.broadcast %103 : vector<8x1xf32> to vector<8x32xf32>
      %109 = arith.mulf %108, %107 : vector<8x32xf32>
      %cst_58 = arith.constant dense<0.000000e+00> : vector<8xf32>
      %110 = vector.multi_reduction <add>, %106, %cst_58 [1] : vector<8x8xf32> to vector<8xf32>
      %111 = vector.shape_cast %110 : vector<8xf32> to vector<8x1xf32>
      %112 = vector.broadcast %111 : vector<8x1xf32> to vector<8x32xf32>
      %113 = arith.addf %109, %112 : vector<8x32xf32>
      %c0_59 = arith.constant 0 : index
      %c64_60 = arith.constant 64 : index
      %114 = vector.load %arg11[%c0_59, %c64_60] : memref<8x128xf32, #tpu.memory_space<vmem>>, vector<8x32xf32>
      tpu.vector_store %arg11[%c0_59, %c64_60], %113 {strides = array<i32>} : memref<8x128xf32, #tpu.memory_space<vmem>>, vector<8x32xf32>,
      %115 = arith.truncf %106 : vector<8x8xf32> to vector<8x8xbf16>
      %116 = vector.extract_strided_slice %8 {offsets = [0, 64], sizes = [8, 32], strides = [1, 1]} : vector<8x128xbf16> to vector<8x32xbf16>
      %cst_61 = arith.constant dense<0.000000e+00> : vector<8x32xf32>
      %117 = tpu.matmul %115, %116, %cst_61 {dimension_numbers = #tpu.dot_dimension_numbers<[1], [0], [0], [1], [0, 0, 1, 1], [], []>} : vector<8x8xbf16>, vector<8x32xbf16>, vector<8x32xf32> -> vector<8x32xf32>
      %c0_62 = arith.constant 0 : index
      %c64_63 = arith.constant 64 : index
      %118 = vector.load %arg12[%c0_62, %c64_63] : memref<8x128xf32, #tpu.memory_space<vmem>>, vector<8x32xf32>
      %119 = vector.broadcast %103 : vector<8x1xf32> to vector<8x32xf32>
      %120 = arith.mulf %119, %118 : vector<8x32xf32>
      %121 = arith.addf %120, %117 : vector<8x32xf32>
      %c0_64 = arith.constant 0 : index
      %c64_65 = arith.constant 64 : index
      %122 = vector.load %arg12[%c0_64, %c64_65] : memref<8x128xf32, #tpu.memory_space<vmem>>, vector<8x32xf32>
      tpu.vector_store %arg12[%c0_64, %c64_65], %121 {strides = array<i32>} : memref<8x128xf32, #tpu.memory_space<vmem>>, vector<8x32xf32>,
      %c2_66 = arith.constant 2 : index
      %c0_67 = arith.constant 0 : index
      %c0_68 = arith.constant 0 : index
      %123 = vector.load %arg10[%c2_66, %c0_67, %c0_68] : memref<4x8x1xf32, #tpu.memory_space<vmem>>, vector<1x8x1xf32>
      %124 = vector.shape_cast %123 : vector<1x8x1xf32> to vector<8x1xf32>
      %125 = vector.shape_cast %101 : vector<8x1xf32> to vector<1x8x1xf32>
      tpu.vector_store %arg10[%c2_66, %c0_67, %c0_68], %125 {strides = array<i32>} : memref<4x8x1xf32, #tpu.memory_space<vmem>>, vector<1x8x1xf32>,
      %c0_69 = arith.constant 0 : index
      %c96 = arith.constant 96 : index
      %126 = vector.load %arg9[%c0_69, %c96] : memref<8x128xbf16, #tpu.memory_space<vmem>>, vector<8x32xbf16>
      %127 = vector.extract_strided_slice %5 {offsets = [0, 96], sizes = [8, 32], strides = [1, 1]} : vector<8x128xbf16> to vector<8x32xbf16>
      %cst_70 = arith.constant dense<0.000000e+00> : vector<8x8xf32>
      %128 = tpu.matmul %126, %127, %cst_70 {dimension_numbers = #tpu.dot_dimension_numbers<[1], [1], [0], [0], [0, 0, 1, 0], [], []>} : vector<8x32xbf16>, vector<8x32xbf16>, vector<8x8xf32> -> vector<8x8xf32>
      %129 = vector.broadcast %23 : vector<1x8xf32> to vector<8x8xf32>
      %130 = arith.addf %128, %129 : vector<8x8xf32>
      %c3 = arith.constant 3 : index
      %c0_71 = arith.constant 0 : index
      %c0_72 = arith.constant 0 : index
      %131 = vector.load %arg10[%c3, %c0_71, %c0_72] : memref<4x8x1xf32, #tpu.memory_space<vmem>>, vector<1x8x1xf32>
      %132 = vector.shape_cast %131 : vector<1x8x1xf32> to vector<8x1xf32>
      %cst_73 = arith.constant dense<0xFF800000> : vector<8xf32>
      %133 = vector.multi_reduction <maximumf>, %130, %cst_73 [1] : vector<8x8xf32> to vector<8xf32>
      %134 = vector.shape_cast %133 : vector<8xf32> to vector<8x1xf32>
      %135 = arith.maximumf %132, %134 : vector<8x1xf32>
      %136 = arith.subf %132, %135 : vector<8x1xf32>
      %137 = math.exp %136 : vector<8x1xf32>
      %138 = vector.broadcast %135 : vector<8x1xf32> to vector<8x8xf32>
      %139 = arith.subf %130, %138 : vector<8x8xf32>
      %140 = math.exp %139 : vector<8x8xf32>
      %c0_74 = arith.constant 0 : index
      %c96_75 = arith.constant 96 : index
      %141 = vector.load %arg11[%c0_74, %c96_75] : memref<8x128xf32, #tpu.memory_space<vmem>>, vector<8x32xf32>
      %142 = vector.broadcast %137 : vector<8x1xf32> to vector<8x32xf32>
      %143 = arith.mulf %142, %141 : vector<8x32xf32>
      %cst_76 = arith.constant dense<0.000000e+00> : vector<8xf32>
      %144 = vector.multi_reduction <add>, %140, %cst_76 [1] : vector<8x8xf32> to vector<8xf32>
      %145 = vector.shape_cast %144 : vector<8xf32> to vector<8x1xf32>
      %146 = vector.broadcast %145 : vector<8x1xf32> to vector<8x32xf32>
      %147 = arith.addf %143, %146 : vector<8x32xf32>
      %c0_77 = arith.constant 0 : index
      %c96_78 = arith.constant 96 : index
      %148 = vector.load %arg11[%c0_77, %c96_78] : memref<8x128xf32, #tpu.memory_space<vmem>>, vector<8x32xf32>
      tpu.vector_store %arg11[%c0_77, %c96_78], %147 {strides = array<i32>} : memref<8x128xf32, #tpu.memory_space<vmem>>, vector<8x32xf32>,
      %149 = arith.truncf %140 : vector<8x8xf32> to vector<8x8xbf16>
      %150 = vector.extract_strided_slice %8 {offsets = [0, 96], sizes = [8, 32], strides = [1, 1]} : vector<8x128xbf16> to vector<8x32xbf16>
      %cst_79 = arith.constant dense<0.000000e+00> : vector<8x32xf32>
      %151 = tpu.matmul %149, %150, %cst_79 {dimension_numbers = #tpu.dot_dimension_numbers<[1], [0], [0], [1], [0, 0, 1, 1], [], []>} : vector<8x8xbf16>, vector<8x32xbf16>, vector<8x32xf32> -> vector<8x32xf32>
      %c0_80 = arith.constant 0 : index
      %c96_81 = arith.constant 96 : index
      %152 = vector.load %arg12[%c0_80, %c96_81] : memref<8x128xf32, #tpu.memory_space<vmem>>, vector<8x32xf32>
      %153 = vector.broadcast %137 : vector<8x1xf32> to vector<8x32xf32>
      %154 = arith.mulf %153, %152 : vector<8x32xf32>
      %155 = arith.addf %154, %151 : vector<8x32xf32>
      %c0_82 = arith.constant 0 : index
      %c96_83 = arith.constant 96 : index
      %156 = vector.load %arg12[%c0_82, %c96_83] : memref<8x128xf32, #tpu.memory_space<vmem>>, vector<8x32xf32>
      tpu.vector_store %arg12[%c0_82, %c96_83], %155 {strides = array<i32>} : memref<8x128xf32, #tpu.memory_space<vmem>>, vector<8x32xf32>,
      %c3_84 = arith.constant 3 : index
      %c0_85 = arith.constant 0 : index
      %c0_86 = arith.constant 0 : index
      %157 = vector.load %arg10[%c3_84, %c0_85, %c0_86] : memref<4x8x1xf32, #tpu.memory_space<vmem>>, vector<1x8x1xf32>
      %158 = vector.shape_cast %157 : vector<1x8x1xf32> to vector<8x1xf32>
      %159 = vector.shape_cast %135 : vector<8x1xf32> to vector<1x8x1xf32>
      tpu.vector_store %arg10[%c3_84, %c0_85, %c0_86], %159 {strides = array<i32>} : memref<4x8x1xf32, #tpu.memory_space<vmem>>, vector<1x8x1xf32>,
    } else {
    }
    %true = arith.constant true
    %16 = arith.xori %13, %true : i1
    %17 = arith.extui %16 : i1 to i32
    %c0_i32_8 = arith.constant 0 : i32
    %18 = arith.cmpi ne, %17, %c0_i32_8 : i32
    scf.if %18 {
      %c0_11 = arith.constant 0 : index
      %c0_12 = arith.constant 0 : index
      %22 = vector.load %arg9[%c0_11, %c0_12] : memref<8x128xbf16, #tpu.memory_space<vmem>>, vector<8x32xbf16>
      %23 = vector.extract_strided_slice %5 {offsets = [0, 0], sizes = [8, 32], strides = [1, 1]} : vector<8x128xbf16> to vector<8x32xbf16>
      %cst = arith.constant dense<0.000000e+00> : vector<8x8xf32>
      %24 = tpu.matmul %22, %23, %cst {dimension_numbers = #tpu.dot_dimension_numbers<[1], [1], [0], [0], [0, 0, 1, 0], [], []>} : vector<8x32xbf16>, vector<8x32xbf16>, vector<8x8xf32> -> vector<8x8xf32>
      %c0_13 = arith.constant 0 : index
      %c0_14 = arith.constant 0 : index
      %c0_15 = arith.constant 0 : index
      %25 = vector.load %arg10[%c0_13, %c0_14, %c0_15] : memref<4x8x1xf32, #tpu.memory_space<vmem>>, vector<1x8x1xf32>
      %26 = vector.shape_cast %25 : vector<1x8x1xf32> to vector<8x1xf32>
      %cst_16 = arith.constant dense<0xFF800000> : vector<8xf32>
      %27 = vector.multi_reduction <maximumf>, %24, %cst_16 [1] : vector<8x8xf32> to vector<8xf32>
      %28 = vector.shape_cast %27 : vector<8xf32> to vector<8x1xf32>
      %29 = arith.maximumf %26, %28 : vector<8x1xf32>
      %30 = arith.subf %26, %29 : vector<8x1xf32>
      %31 = math.exp %30 : vector<8x1xf32>
      %32 = vector.broadcast %29 : vector<8x1xf32> to vector<8x8xf32>
      %33 = arith.subf %24, %32 : vector<8x8xf32>
      %34 = math.exp %33 : vector<8x8xf32>
      %c0_17 = arith.constant 0 : index
      %c0_18 = arith.constant 0 : index
      %35 = vector.load %arg11[%c0_17, %c0_18] : memref<8x128xf32, #tpu.memory_space<vmem>>, vector<8x32xf32>
      %36 = vector.broadcast %31 : vector<8x1xf32> to vector<8x32xf32>
      %37 = arith.mulf %36, %35 : vector<8x32xf32>
      %cst_19 = arith.constant dense<0.000000e+00> : vector<8xf32>
      %38 = vector.multi_reduction <add>, %34, %cst_19 [1] : vector<8x8xf32> to vector<8xf32>
      %39 = vector.shape_cast %38 : vector<8xf32> to vector<8x1xf32>
      %40 = vector.broadcast %39 : vector<8x1xf32> to vector<8x32xf32>
      %41 = arith.addf %37, %40 : vector<8x32xf32>
      %c0_20 = arith.constant 0 : index
      %c0_21 = arith.constant 0 : index
      %42 = vector.load %arg11[%c0_20, %c0_21] : memref<8x128xf32, #tpu.memory_space<vmem>>, vector<8x32xf32>
      tpu.vector_store %arg11[%c0_20, %c0_21], %41 {strides = array<i32>} : memref<8x128xf32, #tpu.memory_space<vmem>>, vector<8x32xf32>,
      %43 = arith.truncf %34 : vector<8x8xf32> to vector<8x8xbf16>
      %44 = vector.extract_strided_slice %8 {offsets = [0, 0], sizes = [8, 32], strides = [1, 1]} : vector<8x128xbf16> to vector<8x32xbf16>
      %cst_22 = arith.constant dense<0.000000e+00> : vector<8x32xf32>
      %45 = tpu.matmul %43, %44, %cst_22 {dimension_numbers = #tpu.dot_dimension_numbers<[1], [0], [0], [1], [0, 0, 1, 1], [], []>} : vector<8x8xbf16>, vector<8x32xbf16>, vector<8x32xf32> -> vector<8x32xf32>
      %c0_23 = arith.constant 0 : index
      %c0_24 = arith.constant 0 : index
      %46 = vector.load %arg12[%c0_23, %c0_24] : memref<8x128xf32, #tpu.memory_space<vmem>>, vector<8x32xf32>
      %47 = vector.broadcast %31 : vector<8x1xf32> to vector<8x32xf32>
      %48 = arith.mulf %47, %46 : vector<8x32xf32>
      %49 = arith.addf %48, %45 : vector<8x32xf32>
      %c0_25 = arith.constant 0 : index
      %c0_26 = arith.constant 0 : index
      %50 = vector.load %arg12[%c0_25, %c0_26] : memref<8x128xf32, #tpu.memory_space<vmem>>, vector<8x32xf32>
      tpu.vector_store %arg12[%c0_25, %c0_26], %49 {strides = array<i32>} : memref<8x128xf32, #tpu.memory_space<vmem>>, vector<8x32xf32>,
      %c0_27 = arith.constant 0 : index
      %c0_28 = arith.constant 0 : index
      %c0_29 = arith.constant 0 : index
      %51 = vector.load %arg10[%c0_27, %c0_28, %c0_29] : memref<4x8x1xf32, #tpu.memory_space<vmem>>, vector<1x8x1xf32>
      %52 = vector.shape_cast %51 : vector<1x8x1xf32> to vector<8x1xf32>
      %53 = vector.shape_cast %29 : vector<8x1xf32> to vector<1x8x1xf32>
      tpu.vector_store %arg10[%c0_27, %c0_28, %c0_29], %53 {strides = array<i32>} : memref<4x8x1xf32, #tpu.memory_space<vmem>>, vector<1x8x1xf32>,
      %c0_30 = arith.constant 0 : index
      %c32 = arith.constant 32 : index
      %54 = vector.load %arg9[%c0_30, %c32] : memref<8x128xbf16, #tpu.memory_space<vmem>>, vector<8x32xbf16>
      %55 = vector.extract_strided_slice %5 {offsets = [0, 32], sizes = [8, 32], strides = [1, 1]} : vector<8x128xbf16> to vector<8x32xbf16>
      %cst_31 = arith.constant dense<0.000000e+00> : vector<8x8xf32>
      %56 = tpu.matmul %54, %55, %cst_31 {dimension_numbers = #tpu.dot_dimension_numbers<[1], [1], [0], [0], [0, 0, 1, 0], [], []>} : vector<8x32xbf16>, vector<8x32xbf16>, vector<8x8xf32> -> vector<8x8xf32>
      %c1 = arith.constant 1 : index
      %c0_32 = arith.constant 0 : index
      %c0_33 = arith.constant 0 : index
      %57 = vector.load %arg10[%c1, %c0_32, %c0_33] : memref<4x8x1xf32, #tpu.memory_space<vmem>>, vector<1x8x1xf32>
      %58 = vector.shape_cast %57 : vector<1x8x1xf32> to vector<8x1xf32>
      %cst_34 = arith.constant dense<0xFF800000> : vector<8xf32>
      %59 = vector.multi_reduction <maximumf>, %56, %cst_34 [1] : vector<8x8xf32> to vector<8xf32>
      %60 = vector.shape_cast %59 : vector<8xf32> to vector<8x1xf32>
      %61 = arith.maximumf %58, %60 : vector<8x1xf32>
      %62 = arith.subf %58, %61 : vector<8x1xf32>
      %63 = math.exp %62 : vector<8x1xf32>
      %64 = vector.broadcast %61 : vector<8x1xf32> to vector<8x8xf32>
      %65 = arith.subf %56, %64 : vector<8x8xf32>
      %66 = math.exp %65 : vector<8x8xf32>
      %c0_35 = arith.constant 0 : index
      %c32_36 = arith.constant 32 : index
      %67 = vector.load %arg11[%c0_35, %c32_36] : memref<8x128xf32, #tpu.memory_space<vmem>>, vector<8x32xf32>
      %68 = vector.broadcast %63 : vector<8x1xf32> to vector<8x32xf32>
      %69 = arith.mulf %68, %67 : vector<8x32xf32>
      %cst_37 = arith.constant dense<0.000000e+00> : vector<8xf32>
      %70 = vector.multi_reduction <add>, %66, %cst_37 [1] : vector<8x8xf32> to vector<8xf32>
      %71 = vector.shape_cast %70 : vector<8xf32> to vector<8x1xf32>
      %72 = vector.broadcast %71 : vector<8x1xf32> to vector<8x32xf32>
      %73 = arith.addf %69, %72 : vector<8x32xf32>
      %c0_38 = arith.constant 0 : index
      %c32_39 = arith.constant 32 : index
      %74 = vector.load %arg11[%c0_38, %c32_39] : memref<8x128xf32, #tpu.memory_space<vmem>>, vector<8x32xf32>
      tpu.vector_store %arg11[%c0_38, %c32_39], %73 {strides = array<i32>} : memref<8x128xf32, #tpu.memory_space<vmem>>, vector<8x32xf32>,
      %75 = arith.truncf %66 : vector<8x8xf32> to vector<8x8xbf16>
      %76 = vector.extract_strided_slice %8 {offsets = [0, 32], sizes = [8, 32], strides = [1, 1]} : vector<8x128xbf16> to vector<8x32xbf16>
      %cst_40 = arith.constant dense<0.000000e+00> : vector<8x32xf32>
      %77 = tpu.matmul %75, %76, %cst_40 {dimension_numbers = #tpu.dot_dimension_numbers<[1], [0], [0], [1], [0, 0, 1, 1], [], []>} : vector<8x8xbf16>, vector<8x32xbf16>, vector<8x32xf32> -> vector<8x32xf32>
      %c0_41 = arith.constant 0 : index
      %c32_42 = arith.constant 32 : index
      %78 = vector.load %arg12[%c0_41, %c32_42] : memref<8x128xf32, #tpu.memory_space<vmem>>, vector<8x32xf32>
      %79 = vector.broadcast %63 : vector<8x1xf32> to vector<8x32xf32>
      %80 = arith.mulf %79, %78 : vector<8x32xf32>
      %81 = arith.addf %80, %77 : vector<8x32xf32>
      %c0_43 = arith.constant 0 : index
      %c32_44 = arith.constant 32 : index
      %82 = vector.load %arg12[%c0_43, %c32_44] : memref<8x128xf32, #tpu.memory_space<vmem>>, vector<8x32xf32>
      tpu.vector_store %arg12[%c0_43, %c32_44], %81 {strides = array<i32>} : memref<8x128xf32, #tpu.memory_space<vmem>>, vector<8x32xf32>,
      %c1_45 = arith.constant 1 : index
      %c0_46 = arith.constant 0 : index
      %c0_47 = arith.constant 0 : index
      %83 = vector.load %arg10[%c1_45, %c0_46, %c0_47] : memref<4x8x1xf32, #tpu.memory_space<vmem>>, vector<1x8x1xf32>
      %84 = vector.shape_cast %83 : vector<1x8x1xf32> to vector<8x1xf32>
      %85 = vector.shape_cast %61 : vector<8x1xf32> to vector<1x8x1xf32>
      tpu.vector_store %arg10[%c1_45, %c0_46, %c0_47], %85 {strides = array<i32>} : memref<4x8x1xf32, #tpu.memory_space<vmem>>, vector<1x8x1xf32>,
      %c0_48 = arith.constant 0 : index
      %c64 = arith.constant 64 : index
      %86 = vector.load %arg9[%c0_48, %c64] : memref<8x128xbf16, #tpu.memory_space<vmem>>, vector<8x32xbf16>
      %87 = vector.extract_strided_slice %5 {offsets = [0, 64], sizes = [8, 32], strides = [1, 1]} : vector<8x128xbf16> to vector<8x32xbf16>
      %cst_49 = arith.constant dense<0.000000e+00> : vector<8x8xf32>
      %88 = tpu.matmul %86, %87, %cst_49 {dimension_numbers = #tpu.dot_dimension_numbers<[1], [1], [0], [0], [0, 0, 1, 0], [], []>} : vector<8x32xbf16>, vector<8x32xbf16>, vector<8x8xf32> -> vector<8x8xf32>
      %c2 = arith.constant 2 : index
      %c0_50 = arith.constant 0 : index
      %c0_51 = arith.constant 0 : index
      %89 = vector.load %arg10[%c2, %c0_50, %c0_51] : memref<4x8x1xf32, #tpu.memory_space<vmem>>, vector<1x8x1xf32>
      %90 = vector.shape_cast %89 : vector<1x8x1xf32> to vector<8x1xf32>
      %cst_52 = arith.constant dense<0xFF800000> : vector<8xf32>
      %91 = vector.multi_reduction <maximumf>, %88, %cst_52 [1] : vector<8x8xf32> to vector<8xf32>
      %92 = vector.shape_cast %91 : vector<8xf32> to vector<8x1xf32>
      %93 = arith.maximumf %90, %92 : vector<8x1xf32>
      %94 = arith.subf %90, %93 : vector<8x1xf32>
      %95 = math.exp %94 : vector<8x1xf32>
      %96 = vector.broadcast %93 : vector<8x1xf32> to vector<8x8xf32>
      %97 = arith.subf %88, %96 : vector<8x8xf32>
      %98 = math.exp %97 : vector<8x8xf32>
      %c0_53 = arith.constant 0 : index
      %c64_54 = arith.constant 64 : index
      %99 = vector.load %arg11[%c0_53, %c64_54] : memref<8x128xf32, #tpu.memory_space<vmem>>, vector<8x32xf32>
      %100 = vector.broadcast %95 : vector<8x1xf32> to vector<8x32xf32>
      %101 = arith.mulf %100, %99 : vector<8x32xf32>
      %cst_55 = arith.constant dense<0.000000e+00> : vector<8xf32>
      %102 = vector.multi_reduction <add>, %98, %cst_55 [1] : vector<8x8xf32> to vector<8xf32>
      %103 = vector.shape_cast %102 : vector<8xf32> to vector<8x1xf32>
      %104 = vector.broadcast %103 : vector<8x1xf32> to vector<8x32xf32>
      %105 = arith.addf %101, %104 : vector<8x32xf32>
      %c0_56 = arith.constant 0 : index
      %c64_57 = arith.constant 64 : index
      %106 = vector.load %arg11[%c0_56, %c64_57] : memref<8x128xf32, #tpu.memory_space<vmem>>, vector<8x32xf32>
      tpu.vector_store %arg11[%c0_56, %c64_57], %105 {strides = array<i32>} : memref<8x128xf32, #tpu.memory_space<vmem>>, vector<8x32xf32>,
      %107 = arith.truncf %98 : vector<8x8xf32> to vector<8x8xbf16>
      %108 = vector.extract_strided_slice %8 {offsets = [0, 64], sizes = [8, 32], strides = [1, 1]} : vector<8x128xbf16> to vector<8x32xbf16>
      %cst_58 = arith.constant dense<0.000000e+00> : vector<8x32xf32>
      %109 = tpu.matmul %107, %108, %cst_58 {dimension_numbers = #tpu.dot_dimension_numbers<[1], [0], [0], [1], [0, 0, 1, 1], [], []>} : vector<8x8xbf16>, vector<8x32xbf16>, vector<8x32xf32> -> vector<8x32xf32>
      %c0_59 = arith.constant 0 : index
      %c64_60 = arith.constant 64 : index
      %110 = vector.load %arg12[%c0_59, %c64_60] : memref<8x128xf32, #tpu.memory_space<vmem>>, vector<8x32xf32>
      %111 = vector.broadcast %95 : vector<8x1xf32> to vector<8x32xf32>
      %112 = arith.mulf %111, %110 : vector<8x32xf32>
      %113 = arith.addf %112, %109 : vector<8x32xf32>
      %c0_61 = arith.constant 0 : index
      %c64_62 = arith.constant 64 : index
      %114 = vector.load %arg12[%c0_61, %c64_62] : memref<8x128xf32, #tpu.memory_space<vmem>>, vector<8x32xf32>
      tpu.vector_store %arg12[%c0_61, %c64_62], %113 {strides = array<i32>} : memref<8x128xf32, #tpu.memory_space<vmem>>, vector<8x32xf32>,
      %c2_63 = arith.constant 2 : index
      %c0_64 = arith.constant 0 : index
      %c0_65 = arith.constant 0 : index
      %115 = vector.load %arg10[%c2_63, %c0_64, %c0_65] : memref<4x8x1xf32, #tpu.memory_space<vmem>>, vector<1x8x1xf32>
      %116 = vector.shape_cast %115 : vector<1x8x1xf32> to vector<8x1xf32>
      %117 = vector.shape_cast %93 : vector<8x1xf32> to vector<1x8x1xf32>
      tpu.vector_store %arg10[%c2_63, %c0_64, %c0_65], %117 {strides = array<i32>} : memref<4x8x1xf32, #tpu.memory_space<vmem>>, vector<1x8x1xf32>,
      %c0_66 = arith.constant 0 : index
      %c96 = arith.constant 96 : index
      %118 = vector.load %arg9[%c0_66, %c96] : memref<8x128xbf16, #tpu.memory_space<vmem>>, vector<8x32xbf16>
      %119 = vector.extract_strided_slice %5 {offsets = [0, 96], sizes = [8, 32], strides = [1, 1]} : vector<8x128xbf16> to vector<8x32xbf16>
      %cst_67 = arith.constant dense<0.000000e+00> : vector<8x8xf32>
      %120 = tpu.matmul %118, %119, %cst_67 {dimension_numbers = #tpu.dot_dimension_numbers<[1], [1], [0], [0], [0, 0, 1, 0], [], []>} : vector<8x32xbf16>, vector<8x32xbf16>, vector<8x8xf32> -> vector<8x8xf32>
      %c3 = arith.constant 3 : index
      %c0_68 = arith.constant 0 : index
      %c0_69 = arith.constant 0 : index
      %121 = vector.load %arg10[%c3, %c0_68, %c0_69] : memref<4x8x1xf32, #tpu.memory_space<vmem>>, vector<1x8x1xf32>
      %122 = vector.shape_cast %121 : vector<1x8x1xf32> to vector<8x1xf32>
      %cst_70 = arith.constant dense<0xFF800000> : vector<8xf32>
      %123 = vector.multi_reduction <maximumf>, %120, %cst_70 [1] : vector<8x8xf32> to vector<8xf32>
      %124 = vector.shape_cast %123 : vector<8xf32> to vector<8x1xf32>
      %125 = arith.maximumf %122, %124 : vector<8x1xf32>
      %126 = arith.subf %122, %125 : vector<8x1xf32>
      %127 = math.exp %126 : vector<8x1xf32>
      %128 = vector.broadcast %125 : vector<8x1xf32> to vector<8x8xf32>
      %129 = arith.subf %120, %128 : vector<8x8xf32>
      %130 = math.exp %129 : vector<8x8xf32>
      %c0_71 = arith.constant 0 : index
      %c96_72 = arith.constant 96 : index
      %131 = vector.load %arg11[%c0_71, %c96_72] : memref<8x128xf32, #tpu.memory_space<vmem>>, vector<8x32xf32>
      %132 = vector.broadcast %127 : vector<8x1xf32> to vector<8x32xf32>
      %133 = arith.mulf %132, %131 : vector<8x32xf32>
      %cst_73 = arith.constant dense<0.000000e+00> : vector<8xf32>
      %134 = vector.multi_reduction <add>, %130, %cst_73 [1] : vector<8x8xf32> to vector<8xf32>
      %135 = vector.shape_cast %134 : vector<8xf32> to vector<8x1xf32>
      %136 = vector.broadcast %135 : vector<8x1xf32> to vector<8x32xf32>
      %137 = arith.addf %133, %136 : vector<8x32xf32>
      %c0_74 = arith.constant 0 : index
      %c96_75 = arith.constant 96 : index
      %138 = vector.load %arg11[%c0_74, %c96_75] : memref<8x128xf32, #tpu.memory_space<vmem>>, vector<8x32xf32>
      tpu.vector_store %arg11[%c0_74, %c96_75], %137 {strides = array<i32>} : memref<8x128xf32, #tpu.memory_space<vmem>>, vector<8x32xf32>,
      %139 = arith.truncf %130 : vector<8x8xf32> to vector<8x8xbf16>
      %140 = vector.extract_strided_slice %8 {offsets = [0, 96], sizes = [8, 32], strides = [1, 1]} : vector<8x128xbf16> to vector<8x32xbf16>
      %cst_76 = arith.constant dense<0.000000e+00> : vector<8x32xf32>
      %141 = tpu.matmul %139, %140, %cst_76 {dimension_numbers = #tpu.dot_dimension_numbers<[1], [0], [0], [1], [0, 0, 1, 1], [], []>} : vector<8x8xbf16>, vector<8x32xbf16>, vector<8x32xf32> -> vector<8x32xf32>
      %c0_77 = arith.constant 0 : index
      %c96_78 = arith.constant 96 : index
      %142 = vector.load %arg12[%c0_77, %c96_78] : memref<8x128xf32, #tpu.memory_space<vmem>>, vector<8x32xf32>
      %143 = vector.broadcast %127 : vector<8x1xf32> to vector<8x32xf32>
      %144 = arith.mulf %143, %142 : vector<8x32xf32>
      %145 = arith.addf %144, %141 : vector<8x32xf32>
      %c0_79 = arith.constant 0 : index
      %c96_80 = arith.constant 96 : index
      %146 = vector.load %arg12[%c0_79, %c96_80] : memref<8x128xf32, #tpu.memory_space<vmem>>, vector<8x32xf32>
      tpu.vector_store %arg12[%c0_79, %c96_80], %145 {strides = array<i32>} : memref<8x128xf32, #tpu.memory_space<vmem>>, vector<8x32xf32>,
      %c3_81 = arith.constant 3 : index
      %c0_82 = arith.constant 0 : index
      %c0_83 = arith.constant 0 : index
      %147 = vector.load %arg10[%c3_81, %c0_82, %c0_83] : memref<4x8x1xf32, #tpu.memory_space<vmem>>, vector<1x8x1xf32>
      %148 = vector.shape_cast %147 : vector<1x8x1xf32> to vector<8x1xf32>
      %149 = vector.shape_cast %125 : vector<8x1xf32> to vector<1x8x1xf32>
      tpu.vector_store %arg10[%c3_81, %c0_82, %c0_83], %149 {strides = array<i32>} : memref<4x8x1xf32, #tpu.memory_space<vmem>>, vector<1x8x1xf32>,
    } else {
    }
    %c0_i32_9 = arith.constant 0 : i32
    %19 = arith.cmpi eq, %arg2, %c0_i32_9 : i32
    %20 = arith.extui %19 : i1 to i32
    %c0_i32_10 = arith.constant 0 : i32
    %21 = arith.cmpi ne, %20, %c0_i32_10 : i32
    scf.if %21 {
      %c0_11 = arith.constant 0 : index
      %c0_12 = arith.constant 0 : index
      %22 = vector.load %arg11[%c0_11, %c0_12] : memref<8x128xf32, #tpu.memory_space<vmem>>, vector<8x128xf32>
      %23 = tpu.reciprocal %22 {approx = true} : vector<8x128xf32> -> vector<8x128xf32>
      %c0_13 = arith.constant 0 : index
      %c0_14 = arith.constant 0 : index
      %24 = vector.load %arg12[%c0_13, %c0_14] : memref<8x128xf32, #tpu.memory_space<vmem>>, vector<8x128xf32>
      %25 = arith.mulf %24, %23 : vector<8x128xf32>
      %c0_15 = arith.constant 0 : index
      %c0_16 = arith.constant 0 : index
      %c0_17 = arith.constant 0 : index
      %26 = vector.load %arg8[%c0_15, %c0_16, %c0_17] : memref<1x8x128xf32, #tpu.memory_space<vmem>>, vector<1x8x128xf32>
      %27 = vector.shape_cast %26 : vector<1x8x128xf32> to vector<8x128xf32>
      %28 = vector.shape_cast %25 : vector<8x128xf32> to vector<1x8x128xf32>
      tpu.vector_store %arg8[%c0_15, %c0_16, %c0_17], %28 {strides = array<i32>} : memref<1x8x128xf32, #tpu.memory_space<vmem>>, vector<1x8x128xf32>,
    } else {
    }
    return
  }
  func.func @transform_0(%arg0: i32, %arg1: i32, %arg2: i32, %arg3: memref<2xi32, #tpu.memory_space<smem>>) -> (i32, i32, i32) {
    %c0_i32 = arith.constant 0 : i32
    %c0_i32_0 = arith.constant 0 : i32
    return %arg0, %arg1, %c0_i32 : i32, i32, i32
  }
  func.func @transform_1(%arg0: i32, %arg1: i32, %arg2: i32, %arg3: memref<2xi32, #tpu.memory_space<smem>>) -> (i32, i32, i32) {
    %c0_i32 = arith.constant 0 : i32
    %c0_i32_0 = arith.constant 0 : i32
    return %arg0, %arg2, %c0_i32 : i32, i32, i32
  }
  func.func @transform_2(%arg0: i32, %arg1: i32, %arg2: i32, %arg3: memref<2xi32, #tpu.memory_space<smem>>) -> (i32, i32, i32) {
    %c0_i32 = arith.constant 0 : i32
    %c0_i32_0 = arith.constant 0 : i32
    return %arg0, %arg2, %c0_i32 : i32, i32, i32
  }
  func.func @transform_3(%arg0: i32, %arg1: i32, %arg2: i32, %arg3: memref<2xi32, #tpu.memory_space<smem>>) -> (i32, i32, i32) {
    %c0_i32 = arith.constant 0 : i32
    %c0_i32_0 = arith.constant 0 : i32
    return %arg0, %c0_i32, %arg2 : i32, i32, i32
  }
  func.func @transform_4(%arg0: i32, %arg1: i32, %arg2: i32, %arg3: memref<2xi32, #tpu.memory_space<smem>>) -> (i32, i32, i32) {
    %c0_i32 = arith.constant 0 : i32
    %c0_i32_0 = arith.constant 0 : i32
    return %arg0, %arg1, %c0_i32 : i32, i32, i32
  }
}

</mosaic_0001>

<llo_original>
// kernel: tpu_custom_call.1
$region0: #{tpu_custom_call.1}
  #allocation0 [shape = 'u32[]', space=smem, size = 0x4, offset = 0x4, fixed_abs, tag = 'smem constant byte address 0x4 - core index']
  #allocation1 [shape = 'u32[144,128]{1,0:T(1,128)}', space=vmem, size = 0x12000, scoped, tag = 'internal scratch']
  #allocation2 [shape = 'bf16[8,128]{1,0:T(8,128)(2,1)}', space=vmem, size = 0x800, scoped, tag = 'scratch operand']
  #allocation3 [shape = 'f32[4,8,1]{2,1,0:T(8,128)}', space=vmem, size = 0x4000, scoped, tag = 'scratch operand']
  #allocation4 [shape = 'f32[8,128]{1,0:T(8,128)}', space=vmem, size = 0x1000, scoped, tag = 'scratch operand']
  #allocation5 [shape = 'f32[8,128]{1,0:T(8,128)}', space=vmem, size = 0x1000, scoped, tag = 'scratch operand']
  #allocation6 [shape = 's32[1]{0}', space=sflag, size = 0x4, scoped, tag = 'scoped memory for tpu_custom_call.1']
  #allocation7 [shape = 'u8[512]{0}', space=smem, size = 0x200, scoped, tag = 'prefetched SMEM operand 0']
  %s0 = inlined_call_operand.hbm [shape: s32[2], index: 0, kind: input, shape index: {}]
  %s1 = inlined_call_operand.hbm [shape: f32[2,8,128], index: 1, kind: input, shape index: {}]
  %s2 = inlined_call_operand.hbm [shape: f32[2,8,128], index: 2, kind: input, shape index: {}]
  %s3 = inlined_call_operand.hbm [shape: f32[2,8,128], index: 3, kind: input, shape index: {}]
  %s4 = inlined_call_operand.vmem [shape: f32[2,1,8], index: 4, kind: input, shape index: {}]
  %s5 = inlined_call_operand.hbm [shape: f32[2,8,128], index: 5, kind: output, shape index: {}]
  %s6 = sld [smem:[#allocation0]]
  $region77: #{tpu_custom_call.1} parent=0
    _
  %s8 = ssub.s32 1, %s6
  %s9 = scalar_select 0, %s8, %s6
  %11 = dma.hbm_to_smem %s0, 16, [#allocation7], [#allocation6]
  %12 = dma.done [#allocation6], 16
  %13 = sfence
  $region1: #{tpu_custom_call.1} parent=0
    #allocation8 [shape = 'u8[8192]{0}', space=vmem, size = 0x2000, scoped, tag = 'input window, operand 1']
    #allocation9 [shape = 's32[2]{0}', space=sflag, size = 0x8, scoped, tag = 'scoped memory for tpu_custom_call.1']
    #allocation10 [shape = 's32[2]{0}', space=sflag, size = 0x8, scoped, tag = 'scoped memory for tpu_custom_call.1']
    #allocation11 [shape = 'u8[8192]{0}', space=vmem, size = 0x2000, scoped, tag = 'input window, operand 2']
    #allocation12 [shape = 's32[2]{0}', space=sflag, size = 0x8, scoped, tag = 'scoped memory for tpu_custom_call.1']
    #allocation13 [shape = 'u8[8192]{0}', space=vmem, size = 0x2000, scoped, tag = 'input window, operand 3']
    #allocation14 [shape = 'u8[8192]{0}', space=vmem, size = 0x2000, scoped, tag = 'output window, operand 0']
    %14 = vsyncpa [#allocation9], 0
    %s15 = scalar_lea.sflag [#allocation9], 1
    %16 = vsyncpa %s15, 0
    %17 = vsyncpa [#allocation12], 0
    %s18 = scalar_lea.sflag [#allocation12], 1
    %19 = vsyncpa %s18, 0
    %20 = vsyncpa [#allocation10], 0
    %s21 = scalar_lea.sflag [#allocation10], 1
    %22 = vsyncpa %s21, 0
    loop: start=0, step=1, limit=4
    $region2: #{tpu_custom_call.1} parent=1 // loop_pre_header
      _
    $region3: #{tpu_custom_call.1} parent=1 // loop_header
      %s24 = sphi 0, %s28
      %p25 = scmp.ge.s32.totalorder %s24, 4
      %s31 = sphi 0, %s50
      %s32 = sphi 0, %s46
      %s33 = sphi 0, %s42
      %s34 = sphi 0, %s31
      %s35 = sphi 0, %s32
      %s36 = sphi 0, %s33
      %s37 = sphi 0, %s34
      %s38 = sphi 0, %s35
      %s39 = sphi 0, %s36
      %s55 = sphi 0, %s57
      %s58 = sphi 0, %s55
      %s59 = sphi 0, %s58
      %s75 = sphi 0, %s59
      %s83 = sphi 0, %s85
      %s86 = sphi 0, %s83
      %s87 = sphi 0, %s86
      %s103 = sphi 0, %s87
      %s111 = sphi 0, %s113
      %s114 = sphi 0, %s111
      %s115 = sphi 0, %s114
      %s131 = sphi 0, %s115
      %s139 = sphi 0, %s141
      %s142 = sphi 0, %s139
      %s143 = sphi 0, %s142
      %s159 = sphi 0, %s143
      %s167 = sphi 0, %s169
      %s170 = sphi 0, %s167
      %s171 = sphi 0, %s170
      %s187 = sphi 0, %s171
    $region4: #{tpu_custom_call.1} parent=1 // loop_header_branch
      %27 = sbr.rel (%p25) target = $region8
    $region5: #{tpu_custom_call.1} parent=1 // loop_body
      %s29 = ssub.s32 %s24, 1
      %s30 = ssub.s32 %s24, 2
      %s40 = sadd.s32 1, %s33
      %p41 = scmp.ge.s32.totalorder %s40, 1
      %s42 = scalar_select %p41, 0, %s40
      %s43 = sadd.s32 1, %s32
      %s44 = scalar_select %p41, %s43, %s32
      %p45 = scmp.ge.s32.totalorder %s44, 1
      %s46 = scalar_select %p45, 0, %s44
      %s47 = sadd.s32 1, %s31
      %s48 = scalar_select %p45, %s47, %s31
      %p49 = scmp.ge.s32.totalorder %s48, 2
      %s50 = scalar_select %p49, 0, %s48
      %s51 = ssub.s32 %s31, %s50
      %s52 = ssub.s32 %s32, %s46
      %s53 = sor.u32 %s51, %s52
      %p54 = scmp.eq.s32.totalorder %s53, 0
      %s56 = sadd.s32 %s55, 1
      %s57 = scalar_select %p54, %s55, %s56
      %p60 = pneg %p54
      %p61 = scmp.eq.s32.totalorder %s24, 1
      %p62 = por %p60, %p61
      %p63 = scmp.ne.s32.totalorder %s55, %s58
      %p64 = scmp.eq.s32.totalorder %s24, 0
      %p65 = por %p63, %p64
      %p66 = scmp.ne.s32.totalorder %s55, %s58
      %p67 = scmp.eq.s32.totalorder %s29, 1
      %p68 = por %p66, %p67
      %p69 = scmp.ne.s32.totalorder %s58, %s59
      %p70 = scmp.eq.s32.totalorder %s29, 0
      %p71 = por %p69, %p70
      %p72 = scmp.ne.s32.totalorder %s58, %s59
      %p73 = scmp.eq.s32.totalorder %s30, 1
      %p74 = por %p72, %p73
      %p76 = scmp.ne.s32.totalorder %s59, %s75
      %p77 = scmp.eq.s32.totalorder %s30, 0
      %p78 = por %p76, %p77
      %s79 = ssub.s32 %s31, %s50
      %s80 = ssub.s32 %s33, %s42
      %s81 = sor.u32 %s79, %s80
      %p82 = scmp.eq.s32.totalorder %s81, 0
      %s84 = sadd.s32 %s83, 1
      %s85 = scalar_select %p82, %s83, %s84
      %p88 = pneg %p82
      %p89 = scmp.eq.s32.totalorder %s24, 1
      %p90 = por %p88, %p89
      %p91 = scmp.ne.s32.totalorder %s83, %s86
      %p92 = scmp.eq.s32.totalorder %s24, 0
      %p93 = por %p91, %p92
      %p94 = scmp.ne.s32.totalorder %s83, %s86
      %p95 = scmp.eq.s32.totalorder %s29, 1
      %p96 = por %p94, %p95
      %p97 = scmp.ne.s32.totalorder %s86, %s87
      %p98 = scmp.eq.s32.totalorder %s29, 0
      %p99 = por %p97, %p98
      %p100 = scmp.ne.s32.totalorder %s86, %s87
      %p101 = scmp.eq.s32.totalorder %s30, 1
      %p102 = por %p100, %p101
      %p104 = scmp.ne.s32.totalorder %s87, %s103
      %p105 = scmp.eq.s32.totalorder %s30, 0
      %p106 = por %p104, %p105
      %s107 = ssub.s32 %s31, %s50
      %s108 = ssub.s32 %s33, %s42
      %s109 = sor.u32 %s107, %s108
      %p110 = scmp.eq.s32.totalorder %s109, 0
      %s112 = sadd.s32 %s111, 1
      %s113 = scalar_select %p110, %s111, %s112
      %p116 = pneg %p110
      %p117 = scmp.eq.s32.totalorder %s24, 1
      %p118 = por %p116, %p117
      %p119 = scmp.ne.s32.totalorder %s111, %s114
      %p120 = scmp.eq.s32.totalorder %s24, 0
      %p121 = por %p119, %p120
      %p122 = scmp.ne.s32.totalorder %s111, %s114
      %p123 = scmp.eq.s32.totalorder %s29, 1
      %p124 = por %p122, %p123
      %p125 = scmp.ne.s32.totalorder %s114, %s115
      %p126 = scmp.eq.s32.totalorder %s29, 0
      %p127 = por %p125, %p126
      %p128 = scmp.ne.s32.totalorder %s114, %s115
      %p129 = scmp.eq.s32.totalorder %s30, 1
      %p130 = por %p128, %p129
      %p132 = scmp.ne.s32.totalorder %s115, %s131
      %p133 = scmp.eq.s32.totalorder %s30, 0
      %p134 = por %p132, %p133
      %s135 = ssub.s32 %s31, %s50
      %s136 = ssub.s32 %s33, %s42
      %s137 = sor.u32 %s135, %s136
      %p138 = scmp.eq.s32.totalorder %s137, 0
      %s140 = sadd.s32 %s139, 1
      %s141 = scalar_select %p138, %s139, %s140
      %p144 = pneg %p138
      %p145 = scmp.eq.s32.totalorder %s24, 1
      %p146 = por %p144, %p145
      %p147 = scmp.ne.s32.totalorder %s139, %s142
      %p148 = scmp.eq.s32.totalorder %s24, 0
      %p149 = por %p147, %p148
      %p150 = scmp.ne.s32.totalorder %s139, %s142
      %p151 = scmp.eq.s32.totalorder %s29, 1
      %p152 = por %p150, %p151
      %p153 = scmp.ne.s32.totalorder %s142, %s143
      %p154 = scmp.eq.s32.totalorder %s29, 0
      %p155 = por %p153, %p154
      %p156 = scmp.ne.s32.totalorder %s142, %s143
      %p157 = scmp.eq.s32.totalorder %s30, 1
      %p158 = por %p156, %p157
      %p160 = scmp.ne.s32.totalorder %s143, %s159
      %p161 = scmp.eq.s32.totalorder %s30, 0
      %p162 = por %p160, %p161
      %s163 = ssub.s32 %s31, %s50
      %s164 = ssub.s32 %s32, %s46
      %s165 = sor.u32 %s163, %s164
      %p166 = scmp.eq.s32.totalorder %s165, 0
      %s168 = sadd.s32 %s167, 1
      %s169 = scalar_select %p166, %s167, %s168
      %p172 = pneg %p166
      %p173 = scmp.eq.s32.totalorder %s24, 1
      %p174 = por %p172, %p173
      %p175 = scmp.ne.s32.totalorder %s167, %s170
      %p176 = scmp.eq.s32.totalorder %s24, 0
      %p177 = por %p175, %p176
      %p178 = scmp.ne.s32.totalorder %s167, %s170
      %p179 = scmp.eq.s32.totalorder %s29, 1
      %p180 = por %p178, %p179
      %p181 = scmp.ne.s32.totalorder %s170, %s171
      %p182 = scmp.eq.s32.totalorder %s29, 0
      %p183 = por %p181, %p182
      %p184 = scmp.ne.s32.totalorder %s170, %s171
      %p185 = scmp.eq.s32.totalorder %s30, 1
      %p186 = por %p184, %p185
      %p188 = scmp.ne.s32.totalorder %s171, %s187
      %p189 = scmp.eq.s32.totalorder %s30, 0
      %p190 = por %p188, %p189
      %p191 = scmp.le.s32.totalorder 1, %s24
      %p192 = scmp.lt.s32.totalorder %s24, 3
      %p193 = pnand %p191, %p192
      %p194 = pneg %p193
      // Predicated region
      $region9: #{tpu_custom_call.1} parent=5 // pred_check
        _
      $region10: #{tpu_custom_call.1} parent=5 // pred_check_branch
        %196 = sbr.rel (%p193) target = $region12
      $region11: #{tpu_custom_call.1} parent=5 // pred_region
        %s197 = ssub.s32 %s24, 1
      $region12: #{tpu_custom_call.1} parent=5 // pred_fallthru
        _
      %p198 = scmp.lt.s32.totalorder %s24, 2
      // Predicated region
      $region13: #{tpu_custom_call.1} parent=5 // pred_check
        %p199 = pneg %p198
      $region14: #{tpu_custom_call.1} parent=5 // pred_check_branch
        %201 = sbr.rel (%p199) target = $region16
      $region15: #{tpu_custom_call.1} parent=5 // pred_region
        // Predicated region
        $region17: #{tpu_custom_call.1} parent=15 // pred_check
          %p202 = pneg %p65
        $region18: #{tpu_custom_call.1} parent=15 // pred_check_branch
          %204 = sbr.rel (%p202) target = $region20
        $region19: #{tpu_custom_call.1} parent=15 // pred_region
          %s205 = sand.u32 %s55, 1
          %s206 = scalar_lea.sflag [#allocation9], %s205
          %s207 = sand.u32 %s55, 1
          %s208 = smul.addr %s207, 8
          %s209 = scalar_lea.vmem [#allocation8], %s208
          %s211 = ssub.s32 128, 128
          %212 = vsyncadd %s206, %s211
          %s213 = sadd.s32 %s32, %s31
          %s214 = smul.addr %s213, 128
          %s215 = scalar_lea.hbm %s1, %s214
          %s217 = sshll.u32 %s209, 4
          %s218 = int_to_ptr.vmem [resolvable:$true] %s217
          %220 = dma.hbm_to_vmem [thread:$0]  %s215, 128, %s218, %s206
        $region20: #{tpu_custom_call.1} parent=15 // pred_fallthru
          _
        // Predicated region
        $region21: #{tpu_custom_call.1} parent=15 // pred_check
          %p221 = pneg %p93
        $region22: #{tpu_custom_call.1} parent=15 // pred_check_branch
          %223 = sbr.rel (%p221) target = $region24
        $region23: #{tpu_custom_call.1} parent=15 // pred_region
          %s224 = sand.u32 %s24, 1
          %s225 = scalar_lea.sflag [#allocation12], %s224
          %s226 = sand.u32 %s83, 1
          %s227 = smul.addr %s226, 8
          %s228 = scalar_lea.vmem [#allocation11], %s227
          %s230 = ssub.s32 128, 128
          %231 = vsyncadd %s225, %s230
          %s232 = sadd.s32 %s33, %s31
          %s233 = smul.addr %s232, 128
          %s234 = scalar_lea.hbm %s2, %s233
          %s236 = sshll.u32 %s228, 4
          %s237 = int_to_ptr.vmem [resolvable:$true] %s236
          %239 = dma.hbm_to_vmem [thread:$0]  %s234, 128, %s237, %s225
        $region24: #{tpu_custom_call.1} parent=15 // pred_fallthru
          _
        // Predicated region
        $region25: #{tpu_custom_call.1} parent=15 // pred_check
          %p240 = pneg %p121
        $region26: #{tpu_custom_call.1} parent=15 // pred_check_branch
          %242 = sbr.rel (%p240) target = $region28
        $region27: #{tpu_custom_call.1} parent=15 // pred_region
          %s243 = sand.u32 %s24, 1
          %s244 = scalar_lea.sflag [#allocation12], %s243
          %s245 = sand.u32 %s111, 1
          %s246 = smul.addr %s245, 8
          %s247 = scalar_lea.vmem [#allocation13], %s246
          %s249 = ssub.s32 128, 128
          %250 = vsyncadd %s244, %s249
          %s251 = sadd.s32 %s33, %s31
          %s252 = smul.addr %s251, 128
          %s253 = scalar_lea.hbm %s3, %s252
          %s255 = sshll.u32 %s247, 4
          %s256 = int_to_ptr.vmem [resolvable:$true] %s255
          %258 = dma.hbm_to_vmem [thread:$0]  %s253, 128, %s256, %s244
        $region28: #{tpu_custom_call.1} parent=15 // pred_fallthru
          _
        // Predicated region
        $region29: #{tpu_custom_call.1} parent=15 // pred_check
          %p259 = pneg %p149
        $region30: #{tpu_custom_call.1} parent=15 // pred_check_branch
          %261 = sbr.rel (%p259) target = $region32
        $region31: #{tpu_custom_call.1} parent=15 // pred_region
          %p262 = scmp.lt.s32.totalorder %s31, 1
          %s263 = scalar_select %p262, %s31, 1
          %p264 = scmp.lt.s32.totalorder %s33, 0
          %s265 = scalar_select %p264, %s33, 0
          %s266 = sadd.s32 %s265, %s263
          %s267 = scalar_lea.vmem %s4, %s266
        $region32: #{tpu_custom_call.1} parent=15 // pred_fallthru
          _
      $region16: #{tpu_custom_call.1} parent=5 // pred_fallthru
        _
      %p268 = scmp.le.s32.totalorder 1, %s24
      %p269 = scmp.lt.s32.totalorder %s24, 3
      %p270 = pnand %p268, %p269
      %p271 = pneg %p270
      // Predicated region
      $region33: #{tpu_custom_call.1} parent=5 // pred_check
        _
      $region34: #{tpu_custom_call.1} parent=5 // pred_check_branch
        %273 = sbr.rel (%p270) target = $region36
      $region35: #{tpu_custom_call.1} parent=5 // pred_region
        %s274 = ssub.s32 %s24, 1
        %s275 = sand.u32 %s58, 1
        %s276 = scalar_lea.sflag [#allocation9], %s275
        %s277 = sand.u32 %s58, 1
        %s278 = smul.addr %s277, 8
        %s279 = scalar_lea.vmem [#allocation8], %s278
        // Predicated region
        $region37: #{tpu_custom_call.1} parent=35 // pred_check
          %p280 = pneg %p71
        $region38: #{tpu_custom_call.1} parent=35 // pred_check_branch
          %282 = sbr.rel (%p280) target = $region40
        $region39: #{tpu_custom_call.1} parent=35 // pred_region
          %283 = dma.done %s276, 128
        $region40: #{tpu_custom_call.1} parent=35 // pred_fallthru
          _
        %s284 = sand.u32 %s29, 1
        %s285 = scalar_lea.sflag [#allocation12], %s284
        %s286 = sand.u32 %s86, 1
        %s287 = smul.addr %s286, 8
        %s288 = scalar_lea.vmem [#allocation11], %s287
        // Predicated region
        $region41: #{tpu_custom_call.1} parent=35 // pred_check
          %p289 = pneg %p99
        $region42: #{tpu_custom_call.1} parent=35 // pred_check_branch
          %291 = sbr.rel (%p289) target = $region44
        $region43: #{tpu_custom_call.1} parent=35 // pred_region
          %292 = dma.done %s285, 128
        $region44: #{tpu_custom_call.1} parent=35 // pred_fallthru
          _
        %s293 = sand.u32 %s29, 1
        %s294 = scalar_lea.sflag [#allocation12], %s293
        %s295 = sand.u32 %s114, 1
        %s296 = smul.addr %s295, 8
        %s297 = scalar_lea.vmem [#allocation13], %s296
        // Predicated region
        $region45: #{tpu_custom_call.1} parent=35 // pred_check
          %p298 = pneg %p127
        $region46: #{tpu_custom_call.1} parent=35 // pred_check_branch
          %300 = sbr.rel (%p298) target = $region48
        $region47: #{tpu_custom_call.1} parent=35 // pred_region
          %301 = dma.done %s294, 128
        $region48: #{tpu_custom_call.1} parent=35 // pred_fallthru
          _
        %s302 = sand.u32 %s58, 1
        %s303 = scalar_lea.sflag [#allocation9], %s302
        %s304 = sand.u32 %s58, 1
        %s305 = smul.addr %s304, 8
        %s306 = scalar_lea.vmem [#allocation8], %s305
        %p307 = pneg %p71
        %p308 = pneg %p68
        %s309 = sand.u32 %s29, 1
        %s310 = scalar_lea.sflag [#allocation12], %s309
        %s311 = sand.u32 %s86, 1
        %s312 = smul.addr %s311, 8
        %s313 = scalar_lea.vmem [#allocation11], %s312
        %p314 = pneg %p99
        %p315 = pneg %p96
        %s316 = sand.u32 %s29, 1
        %s317 = scalar_lea.sflag [#allocation12], %s316
        %s318 = sand.u32 %s114, 1
        %s319 = smul.addr %s318, 8
        %s320 = scalar_lea.vmem [#allocation13], %s319
        %p321 = pneg %p127
        %p322 = pneg %p124
        %p323 = scmp.lt.s32.totalorder %s34, 1
        %s324 = scalar_select %p323, %s34, 1
        %p325 = scmp.lt.s32.totalorder %s36, 0
        %s326 = scalar_select %p325, %s36, 0
        %s327 = sadd.s32 %s326, %s324
        %s328 = scalar_lea.vmem %s4, %s327
        %p329 = pneg %p155
        %p330 = pneg %p152
        %p331 = pneg %p183
        %p332 = pneg %p180
        %s333 = sand.u32 %s170, 1
        %s334 = scalar_lea.sflag [#allocation10], %s333
        %s335 = sand.u32 %s170, 1
        %s336 = smul.addr %s335, 8
        %s337 = scalar_lea.vmem [#allocation14], %s336
        %p338 = scmp.lt.s32.totalorder %s34, 1
        %s339 = scalar_select %p338, %s34, 1
        %p340 = scmp.lt.s32.totalorder %s36, 0
        %s341 = scalar_select %p340, %s36, 0
        %s342 = sadd.s32 %s341, %s339
        %s343 = scalar_lea.vmem %s4, %s342
        %p345 = scmp.eq.s32.totalorder %s36, 0
        // Predicated region
        $region49: #{tpu_custom_call.1} parent=35 // pred_check
          %p346 = pneg %p345
        $region50: #{tpu_custom_call.1} parent=35 // pred_check_branch
          %348 = sbr.rel (%p346) target = $region52
        $region51: #{tpu_custom_call.1} parent=35 // pred_region
          %v349 = vld [vmem:[%s279] sm:$0xff]
          %v350 = vmul.f32 %v349, 0.17677669
          %v351 = vpack.c.bf16 %v350, %v350
          %352 = vst [vmem:[#allocation2] sm:$0xf] %v351
          %vm353 = vcmask 7168
          %354 = vst.msk [vmem:[#allocation3] sm:$0xff] %vm353, -inf
          %355 = vst.msk [vmem:[#allocation3 + $0x8] sm:$0xff] %vm353, -inf
          %356 = vst.msk [vmem:[#allocation3 + $0x10] sm:$0xff] %vm353, -inf
          %357 = vst.msk [vmem:[#allocation3 + $0x18] sm:$0xff] %vm353, -inf
          %358 = vst [vmem:[#allocation4] sm:$0xff] 0.0
          %359 = vst [vmem:[#allocation5] sm:$0xff] 0.0
        $region52: #{tpu_custom_call.1} parent=35 // pred_fallthru
          _
        %v360 = vld [vmem:[%s288] sm:$0xff]
        %v361 = vpack.c.bf16 %v360, %v360
        %v362 = vld [vmem:[%s297] sm:$0xff]
        %v363 = vpack.c.bf16 %v362, %v362
        %s364 = sadd.s32 %s34, %s36
        %s365 = sld [smem:[#allocation7 + %s364]]
        %p366 = scmp.ne.s32.totalorder %s365, 0
        // Predicated region
        $region53: #{tpu_custom_call.1} parent=35 // pred_check
          %p367 = pneg %p366
        $region54: #{tpu_custom_call.1} parent=35 // pred_check_branch
          %369 = sbr.rel (%p367) target = $region56
        $region55: #{tpu_custom_call.1} parent=35 // pred_region
          %v370 = vld [vmem:[%s343] sm:$0x1]
          %v371 = vld [vmem:[#allocation2] sm:$0xf]
          %v373 = vlaneseq
          %v374 = vshrl.u32 %v373, 7
          %v375 = vsub.s32 0, %v374
          %v376 = vrot.slane %v370, %v375
          %vm378 = vcmask 261120
          %v380 = vsel %vm378, %v371, 0
          %v383 = vsel %vm378, %v361, 0
          %385 = vmatprep.subr.bf16.mxu0 0
          %386 = vmatpush1.bf16.xpose.msra.mxu0 %v383
          %387 = vmatprep.subr.bf16.mxu0 0
          %388 = vmatpush1.bf16.xpose.msra.mxu0 0
          %389 = vmatprep.subr.bf16.mxu0 0
          %390 = vmatpush1.bf16.xpose.msra.mxu0 0
          %391 = vmatprep.subr.bf16.mxu0 0
          %392 = vmatpush1.bf16.xpose.msra.mxu0 0
          %393 = vmatprep.subr.bf16.mxu0 0
          %394 = vmatpush1.bf16.xpose.msra.mxu0 0
          %395 = vmatprep.subr.bf16.mxu0 0
          %396 = vmatpush1.bf16.xpose.msra.mxu0 0
          %397 = vmatprep.subr.bf16.mxu0 0
          %398 = vmatpush1.bf16.xpose.msra.mxu0 0
          %399 = vmatprep.subr.bf16.mxu0 0
          %400 = vmatpush1.bf16.xpose.msra.mxu0 0
          %401 = vmatprep.subr.bf16.mxu0 0
          %402 = vmatpush1.bf16.xpose.msra.mxu0 0
          %403 = vmatprep.subr.bf16.mxu0 0
          %404 = vmatpush1.bf16.xpose.msra.mxu0 0
          %405 = vmatprep.subr.bf16.mxu0 0
          %406 = vmatpush1.bf16.xpose.msra.mxu0 0
          %407 = vmatprep.subr.bf16.mxu0 0
          %408 = vmatpush1.bf16.xpose.msra.mxu0 0
          %409 = vmatprep.subr.bf16.mxu0 0
          %410 = vmatpush1.bf16.xpose.msra.mxu0 0
          %411 = vmatprep.subr.bf16.mxu0 0
          %412 = vmatpush1.bf16.xpose.msra.mxu0 0
          %413 = vmatprep.subr.bf16.mxu0 0
          %414 = vmatpush1.bf16.xpose.msra.mxu0 0
          %415 = vmatprep.subr.bf16.mxu0 0
          %416 = vmatpush1.bf16.xpose.msra.mxu0 0
          %417 = vmatprep.mubr.bf16.mxu0 0
          %418 = vmatmul.mubr.bf16.gmra.mrb[0].mxu0 %v380
          %v419 = vpop.f32.mrb[0].mxu0
          %v420 = vadd.f32 %v376, %v419
          %v421 = vpop.f32.mrb[0].mxu0
          %v422 = vpop.f32.mrb[0].mxu0
          %v423 = vpop.f32.mrb[0].mxu0
          %424 = vdwg.mxu0
          %v425 = vld [vmem:[#allocation3] sm:$0xff]
          %vm426 = vcmask 64512
          %v427 = vsel %vm426, %v420, -inf
          %428 = vmax.xlane.f32.xlu0 %v427
          %v429 = vpop.xlane.xlu0 %428
          %v430 = vmax.f32 %v425, %v429
          %v431 = vsub.f32 %v425, %v430
          %v432 = vmul.f32 %v431, 1.442695
          %v433 = vpow.pop %v432
          %435 = vset.pattern.permute.xlu0 0
          %436 = vperm.xlu0 %435, %v430
          %v437 = vpop.permute.xlu0 %436
          %v439 = vsub.f32 %v420, %v437
          %v440 = vmul.f32 %v439, 1.442695
          %v441 = vpow.pop %v440
          %v442 = vld [vmem:[#allocation4] sm:$0xff]
          %444 = vset.pattern.permute.xlu0 0
          %445 = vperm.xlu0 %444, %v433
          %v446 = vpop.permute.xlu0 %445
          %v448 = vmul.f32 %v446, %v442
          %v449 = vsel %vm426, %v441, 0.0
          %450 = vadd.xlane.f32.xlu0 %v449
          %v451 = vpop.xlane.xlu0 %450
          %v452 = vadd.f32 %v448, %v451
          %453 = vst.msk [vmem:[#allocation4] sm:$0xff] %vm378, %v452
          %v454 = vpack.c.bf16 %v441, %v441
          %v456 = vsel %vm426, %v454, 0
          %vm458 = vcmask 1043456
          %v460 = vsel %vm458, %v363, 0
          %462 = vmatprep.subr.bf16.mxu0 0
          %463 = vmatpush1.bf16.msra.mxu0 %v460
          %464 = vmatprep.subr.bf16.mxu0 0
          %465 = vmatpush1.bf16.msra.mxu0 0
          %466 = vmatprep.subr.bf16.mxu0 0
          %467 = vmatpush1.bf16.msra.mxu0 0
          %468 = vmatprep.subr.bf16.mxu0 0
          %469 = vmatpush1.bf16.msra.mxu0 0
          %470 = vmatprep.subr.bf16.mxu0 0
          %471 = vmatpush1.bf16.msra.mxu0 0
          %472 = vmatprep.subr.bf16.mxu0 0
          %473 = vmatpush1.bf16.msra.mxu0 0
          %474 = vmatprep.subr.bf16.mxu0 0
          %475 = vmatpush1.bf16.msra.mxu0 0
          %476 = vmatprep.subr.bf16.mxu0 0
          %477 = vmatpush1.bf16.msra.mxu0 0
          %478 = vmatprep.subr.bf16.mxu0 0
          %479 = vmatpush1.bf16.msra.mxu0 0
          %480 = vmatprep.subr.bf16.mxu0 0
          %481 = vmatpush1.bf16.msra.mxu0 0
          %482 = vmatprep.subr.bf16.mxu0 0
          %483 = vmatpush1.bf16.msra.mxu0 0
          %484 = vmatprep.subr.bf16.mxu0 0
          %485 = vmatpush1.bf16.msra.mxu0 0
          %486 = vmatprep.subr.bf16.mxu0 0
          %487 = vmatpush1.bf16.msra.mxu0 0
          %488 = vmatprep.subr.bf16.mxu0 0
          %489 = vmatpush1.bf16.msra.mxu0 0
          %490 = vmatprep.subr.bf16.mxu0 0
          %491 = vmatpush1.bf16.msra.mxu0 0
          %492 = vmatprep.subr.bf16.mxu0 0
          %493 = vmatpush1.bf16.msra.mxu0 0
          %494 = vmatprep.mubr.bf16.mxu0 0
          %495 = vmatmul.mubr.bf16.gmra.mrb[0].mxu0 %v456
          %v496 = vpop.f32.mrb[0].mxu0
          %v497 = vadd.f32 0.0, %v496
          %v498 = vpop.f32.mrb[0].mxu0
          %v499 = vpop.f32.mrb[0].mxu0
          %v500 = vpop.f32.mrb[0].mxu0
          %501 = vdwg.mxu0
          %v502 = vld [vmem:[#allocation5] sm:$0xff]
          %v503 = vmul.f32 %v446, %v502
          %v504 = vadd.f32 %v503, %v497
          %505 = vst.msk [vmem:[#allocation5] sm:$0xff] %vm378, %v504
          %vm506 = vcmask 7168
          %507 = vst.msk [vmem:[#allocation3] sm:$0xff] %vm506, %v430
          %v508 = vld [vmem:[#allocation2] sm:$0xf]
          %v510 = vunpack.c.l.b16 %v508
          %v511 = vpack.c.b16 %v510, %v510
          %512 = vrot.lane.b32.xlu0 %v511, 96
          %v513 = vpop.permute.xlu0 %512
          %515 = vrot.lane.b32.xlu0 %v361, 96
          %v516 = vpop.permute.xlu0 %515
          %v518 = vsel %vm378, %v513, 0
          %v521 = vsel %vm378, %v516, 0
          %523 = vmatprep.subr.bf16.mxu0 0
          %524 = vmatpush1.bf16.xpose.msra.mxu0 %v521
          %525 = vmatprep.subr.bf16.mxu0 0
          %526 = vmatpush1.bf16.xpose.msra.mxu0 0
          %527 = vmatprep.subr.bf16.mxu0 0
          %528 = vmatpush1.bf16.xpose.msra.mxu0 0
          %529 = vmatprep.subr.bf16.mxu0 0
          %530 = vmatpush1.bf16.xpose.msra.mxu0 0
          %531 = vmatprep.subr.bf16.mxu0 0
          %532 = vmatpush1.bf16.xpose.msra.mxu0 0
          %533 = vmatprep.subr.bf16.mxu0 0
          %534 = vmatpush1.bf16.xpose.msra.mxu0 0
          %535 = vmatprep.subr.bf16.mxu0 0
          %536 = vmatpush1.bf16.xpose.msra.mxu0 0
          %537 = vmatprep.subr.bf16.mxu0 0
          %538 = vmatpush1.bf16.xpose.msra.mxu0 0
          %539 = vmatprep.subr.bf16.mxu0 0
          %540 = vmatpush1.bf16.xpose.msra.mxu0 0
          %541 = vmatprep.subr.bf16.mxu0 0
          %542 = vmatpush1.bf16.xpose.msra.mxu0 0
          %543 = vmatprep.subr.bf16.mxu0 0
          %544 = vmatpush1.bf16.xpose.msra.mxu0 0
          %545 = vmatprep.subr.bf16.mxu0 0
          %546 = vmatpush1.bf16.xpose.msra.mxu0 0
          %547 = vmatprep.subr.bf16.mxu0 0
          %548 = vmatpush1.bf16.xpose.msra.mxu0 0
          %549 = vmatprep.subr.bf16.mxu0 0
          %550 = vmatpush1.bf16.xpose.msra.mxu0 0
          %551 = vmatprep.subr.bf16.mxu0 0
          %552 = vmatpush1.bf16.xpose.msra.mxu0 0
          %553 = vmatprep.subr.bf16.mxu0 0
          %554 = vmatpush1.bf16.xpose.msra.mxu0 0
          %555 = vmatprep.mubr.bf16.mxu0 0
          %556 = vmatmul.mubr.bf16.gmra.mrb[0].mxu0 %v518
          %v557 = vpop.f32.mrb[0].mxu0
          %v558 = vadd.f32 %v376, %v557
          %v559 = vpop.f32.mrb[0].mxu0
          %v560 = vpop.f32.mrb[0].mxu0
          %v561 = vpop.f32.mrb[0].mxu0
          %562 = vdwg.mxu0
          %s563 = scalar_lea.vmem [#allocation3], 8
          %v564 = vld [vmem:[%s563] sm:$0xff]
          %v565 = vsel %vm426, %v558, -inf
          %566 = vmax.xlane.f32.xlu0 %v565
          %v567 = vpop.xlane.xlu0 %566
          %v568 = vmax.f32 %v564, %v567
          %v569 = vsub.f32 %v564, %v568
          %v570 = vmul.f32 %v569, 1.442695
          %v571 = vpow.pop %v570
          %573 = vset.pattern.permute.xlu0 0
          %574 = vperm.xlu0 %573, %v568
          %v575 = vpop.permute.xlu0 %574
          %v577 = vsub.f32 %v558, %v575
          %v578 = vmul.f32 %v577, 1.442695
          %v579 = vpow.pop %v578
          %v580 = vld [vmem:[#allocation4] sm:$0xff]
          %582 = vset.pattern.permute.xlu0 0
          %583 = vperm.xlu0 %582, %v571
          %v584 = vpop.permute.xlu0 %583
          %v586 = vmul.f32 %v584, %v580
          %v587 = vsel %vm426, %v579, 0.0
          %588 = vadd.xlane.f32.xlu0 %v587
          %v589 = vpop.xlane.xlu0 %588
          %v590 = vadd.f32 %v586, %v589
          %vm591 = vcmask 523520
          %592 = vst.msk [vmem:[#allocation4] sm:$0xff] %vm591, %v590
          %v593 = vpack.c.bf16 %v579, %v579
          %595 = vrot.lane.b32.xlu0 %v363, 96
          %v596 = vpop.permute.xlu0 %595
          %v598 = vsel %vm426, %v593, 0
          %v601 = vsel %vm458, %v596, 0
          %603 = vmatprep.subr.bf16.mxu0 0
          %604 = vmatpush1.bf16.msra.mxu0 %v601
          %605 = vmatprep.subr.bf16.mxu0 0
          %606 = vmatpush1.bf16.msra.mxu0 0
          %607 = vmatprep.subr.bf16.mxu0 0
          %608 = vmatpush1.bf16.msra.mxu0 0
          %609 = vmatprep.subr.bf16.mxu0 0
          %610 = vmatpush1.bf16.msra.mxu0 0
          %611 = vmatprep.subr.bf16.mxu0 0
          %612 = vmatpush1.bf16.msra.mxu0 0
          %613 = vmatprep.subr.bf16.mxu0 0
          %614 = vmatpush1.bf16.msra.mxu0 0
          %615 = vmatprep.subr.bf16.mxu0 0
          %616 = vmatpush1.bf16.msra.mxu0 0
          %617 = vmatprep.subr.bf16.mxu0 0
          %618 = vmatpush1.bf16.msra.mxu0 0
          %619 = vmatprep.subr.bf16.mxu0 0
          %620 = vmatpush1.bf16.msra.mxu0 0
          %621 = vmatprep.subr.bf16.mxu0 0
          %622 = vmatpush1.bf16.msra.mxu0 0
          %623 = vmatprep.subr.bf16.mxu0 0
          %624 = vmatpush1.bf16.msra.mxu0 0
          %625 = vmatprep.subr.bf16.mxu0 0
          %626 = vmatpush1.bf16.msra.mxu0 0
          %627 = vmatprep.subr.bf16.mxu0 0
          %628 = vmatpush1.bf16.msra.mxu0 0
          %629 = vmatprep.subr.bf16.mxu0 0
          %630 = vmatpush1.bf16.msra.mxu0 0
          %631 = vmatprep.subr.bf16.mxu0 0
          %632 = vmatpush1.bf16.msra.mxu0 0
          %633 = vmatprep.subr.bf16.mxu0 0
          %634 = vmatpush1.bf16.msra.mxu0 0
          %635 = vmatprep.mubr.bf16.mxu0 0
          %636 = vmatmul.mubr.bf16.gmra.mrb[0].mxu0 %v598
          %v637 = vpop.f32.mrb[0].mxu0
          %v638 = vadd.f32 0.0, %v637
          %v639 = vpop.f32.mrb[0].mxu0
          %v640 = vpop.f32.mrb[0].mxu0
          %v641 = vpop.f32.mrb[0].mxu0
          %642 = vdwg.mxu0
          %v643 = vld [vmem:[#allocation5] sm:$0xff]
          %v644 = vmul.f32 %v584, %v643
          %646 = vrot.lane.b32.xlu0 %v638, 32
          %v647 = vpop.permute.xlu0 %646
          %v649 = vadd.f32 %v644, %v647
          %650 = vst.msk [vmem:[#allocation5] sm:$0xff] %vm591, %v649
          %651 = vst.msk [vmem:[%s563] sm:$0xff] %vm506, %v568
          %v652 = vld [vmem:[#allocation2] sm:$0xf]
          %v654 = vunpack.c.l.b16 %v652
          %v655 = vpack.c.b16 %v654, %v654
          %656 = vrot.lane.b32.xlu0 %v655, 64
          %v657 = vpop.permute.xlu0 %656
          %658 = vrot.lane.b32.xlu0 %v361, 64
          %v659 = vpop.permute.xlu0 %658
          %v661 = vsel %vm378, %v657, 0
          %v664 = vsel %vm378, %v659, 0
          %666 = vmatprep.subr.bf16.mxu0 0
          %667 = vmatpush1.bf16.xpose.msra.mxu0 %v664
          %668 = vmatprep.subr.bf16.mxu0 0
          %669 = vmatpush1.bf16.xpose.msra.mxu0 0
          %670 = vmatprep.subr.bf16.mxu0 0
          %671 = vmatpush1.bf16.xpose.msra.mxu0 0
          %672 = vmatprep.subr.bf16.mxu0 0
          %673 = vmatpush1.bf16.xpose.msra.mxu0 0
          %674 = vmatprep.subr.bf16.mxu0 0
          %675 = vmatpush1.bf16.xpose.msra.mxu0 0
          %676 = vmatprep.subr.bf16.mxu0 0
          %677 = vmatpush1.bf16.xpose.msra.mxu0 0
          %678 = vmatprep.subr.bf16.mxu0 0
          %679 = vmatpush1.bf16.xpose.msra.mxu0 0
          %680 = vmatprep.subr.bf16.mxu0 0
          %681 = vmatpush1.bf16.xpose.msra.mxu0 0
          %682 = vmatprep.subr.bf16.mxu0 0
          %683 = vmatpush1.bf16.xpose.msra.mxu0 0
          %684 = vmatprep.subr.bf16.mxu0 0
          %685 = vmatpush1.bf16.xpose.msra.mxu0 0
          %686 = vmatprep.subr.bf16.mxu0 0
          %687 = vmatpush1.bf16.xpose.msra.mxu0 0
          %688 = vmatprep.subr.bf16.mxu0 0
          %689 = vmatpush1.bf16.xpose.msra.mxu0 0
          %690 = vmatprep.subr.bf16.mxu0 0
          %691 = vmatpush1.bf16.xpose.msra.mxu0 0
          %692 = vmatprep.subr.bf16.mxu0 0
          %693 = vmatpush1.bf16.xpose.msra.mxu0 0
          %694 = vmatprep.subr.bf16.mxu0 0
          %695 = vmatpush1.bf16.xpose.msra.mxu0 0
          %696 = vmatprep.subr.bf16.mxu0 0
          %697 = vmatpush1.bf16.xpose.msra.mxu0 0
          %698 = vmatprep.mubr.bf16.mxu0 0
          %699 = vmatmul.mubr.bf16.gmra.mrb[0].mxu0 %v661
          %v700 = vpop.f32.mrb[0].mxu0
          %v701 = vadd.f32 %v376, %v700
          %v702 = vpop.f32.mrb[0].mxu0
          %v703 = vpop.f32.mrb[0].mxu0
          %v704 = vpop.f32.mrb[0].mxu0
          %705 = vdwg.mxu0
          %s706 = scalar_lea.vmem [#allocation3], 16
          %v707 = vld [vmem:[%s706] sm:$0xff]
          %v708 = vsel %vm426, %v701, -inf
          %709 = vmax.xlane.f32.xlu0 %v708
          %v710 = vpop.xlane.xlu0 %709
          %v711 = vmax.f32 %v707, %v710
          %v712 = vsub.f32 %v707, %v711
          %v713 = vmul.f32 %v712, 1.442695
          %v714 = vpow.pop %v713
          %716 = vset.pattern.permute.xlu0 0
          %717 = vperm.xlu0 %716, %v711
          %v718 = vpop.permute.xlu0 %717
          %v720 = vsub.f32 %v701, %v718
          %v721 = vmul.f32 %v720, 1.442695
          %v722 = vpow.pop %v721
          %v723 = vld [vmem:[#allocation4] sm:$0xff]
          %725 = vset.pattern.permute.xlu0 0
          %726 = vperm.xlu0 %725, %v714
          %v727 = vpop.permute.xlu0 %726
          %v729 = vmul.f32 %v727, %v723
          %v730 = vsel %vm426, %v722, 0.0
          %731 = vadd.xlane.f32.xlu0 %v730
          %v732 = vpop.xlane.xlu0 %731
          %v733 = vadd.f32 %v729, %v732
          %vm734 = vcmask 785920
          %735 = vst.msk [vmem:[#allocation4] sm:$0xff] %vm734, %v733
          %v736 = vpack.c.bf16 %v722, %v722
          %737 = vrot.lane.b32.xlu0 %v363, 64
          %v738 = vpop.permute.xlu0 %737
          %v740 = vsel %vm426, %v736, 0
          %v743 = vsel %vm458, %v738, 0
          %745 = vmatprep.subr.bf16.mxu0 0
          %746 = vmatpush1.bf16.msra.mxu0 %v743
          %747 = vmatprep.subr.bf16.mxu0 0
          %748 = vmatpush1.bf16.msra.mxu0 0
          %749 = vmatprep.subr.bf16.mxu0 0
          %750 = vmatpush1.bf16.msra.mxu0 0
          %751 = vmatprep.subr.bf16.mxu0 0
          %752 = vmatpush1.bf16.msra.mxu0 0
          %753 = vmatprep.subr.bf16.mxu0 0
          %754 = vmatpush1.bf16.msra.mxu0 0
          %755 = vmatprep.subr.bf16.mxu0 0
          %756 = vmatpush1.bf16.msra.mxu0 0
          %757 = vmatprep.subr.bf16.mxu0 0
          %758 = vmatpush1.bf16.msra.mxu0 0
          %759 = vmatprep.subr.bf16.mxu0 0
          %760 = vmatpush1.bf16.msra.mxu0 0
          %761 = vmatprep.subr.bf16.mxu0 0
          %762 = vmatpush1.bf16.msra.mxu0 0
          %763 = vmatprep.subr.bf16.mxu0 0
          %764 = vmatpush1.bf16.msra.mxu0 0
          %765 = vmatprep.subr.bf16.mxu0 0
          %766 = vmatpush1.bf16.msra.mxu0 0
          %767 = vmatprep.subr.bf16.mxu0 0
          %768 = vmatpush1.bf16.msra.mxu0 0
          %769 = vmatprep.subr.bf16.mxu0 0
          %770 = vmatpush1.bf16.msra.mxu0 0
          %771 = vmatprep.subr.bf16.mxu0 0
          %772 = vmatpush1.bf16.msra.mxu0 0
          %773 = vmatprep.subr.bf16.mxu0 0
          %774 = vmatpush1.bf16.msra.mxu0 0
          %775 = vmatprep.subr.bf16.mxu0 0
          %776 = vmatpush1.bf16.msra.mxu0 0
          %777 = vmatprep.mubr.bf16.mxu0 0
          %778 = vmatmul.mubr.bf16.gmra.mrb[0].mxu0 %v740
          %v779 = vpop.f32.mrb[0].mxu0
          %v780 = vadd.f32 0.0, %v779
          %v781 = vpop.f32.mrb[0].mxu0
          %v782 = vpop.f32.mrb[0].mxu0
          %v783 = vpop.f32.mrb[0].mxu0
          %784 = vdwg.mxu0
          %v785 = vld [vmem:[#allocation5] sm:$0xff]
          %v786 = vmul.f32 %v727, %v785
          %788 = vrot.lane.b32.xlu0 %v780, 64
          %v789 = vpop.permute.xlu0 %788
          %v791 = vadd.f32 %v786, %v789
          %792 = vst.msk [vmem:[#allocation5] sm:$0xff] %vm734, %v791
          %793 = vst.msk [vmem:[%s706] sm:$0xff] %vm506, %v711
          %v794 = vld [vmem:[#allocation2] sm:$0xf]
          %v796 = vunpack.c.l.b16 %v794
          %v797 = vpack.c.b16 %v796, %v796
          %798 = vrot.lane.b32.xlu0 %v797, 32
          %v799 = vpop.permute.xlu0 %798
          %800 = vrot.lane.b32.xlu0 %v361, 32
          %v801 = vpop.permute.xlu0 %800
          %v803 = vsel %vm378, %v799, 0
          %v806 = vsel %vm378, %v801, 0
          %808 = vmatprep.subr.bf16.mxu0 0
          %809 = vmatpush1.bf16.xpose.msra.mxu0 %v806
          %810 = vmatprep.subr.bf16.mxu0 0
          %811 = vmatpush1.bf16.xpose.msra.mxu0 0
          %812 = vmatprep.subr.bf16.mxu0 0
          %813 = vmatpush1.bf16.xpose.msra.mxu0 0
          %814 = vmatprep.subr.bf16.mxu0 0
          %815 = vmatpush1.bf16.xpose.msra.mxu0 0
          %816 = vmatprep.subr.bf16.mxu0 0
          %817 = vmatpush1.bf16.xpose.msra.mxu0 0
          %818 = vmatprep.subr.bf16.mxu0 0
          %819 = vmatpush1.bf16.xpose.msra.mxu0 0
          %820 = vmatprep.subr.bf16.mxu0 0
          %821 = vmatpush1.bf16.xpose.msra.mxu0 0
          %822 = vmatprep.subr.bf16.mxu0 0
          %823 = vmatpush1.bf16.xpose.msra.mxu0 0
          %824 = vmatprep.subr.bf16.mxu0 0
          %825 = vmatpush1.bf16.xpose.msra.mxu0 0
          %826 = vmatprep.subr.bf16.mxu0 0
          %827 = vmatpush1.bf16.xpose.msra.mxu0 0
          %828 = vmatprep.subr.bf16.mxu0 0
          %829 = vmatpush1.bf16.xpose.msra.mxu0 0
          %830 = vmatprep.subr.bf16.mxu0 0
          %831 = vmatpush1.bf16.xpose.msra.mxu0 0
          %832 = vmatprep.subr.bf16.mxu0 0
          %833 = vmatpush1.bf16.xpose.msra.mxu0 0
          %834 = vmatprep.subr.bf16.mxu0 0
          %835 = vmatpush1.bf16.xpose.msra.mxu0 0
          %836 = vmatprep.subr.bf16.mxu0 0
          %837 = vmatpush1.bf16.xpose.msra.mxu0 0
          %838 = vmatprep.subr.bf16.mxu0 0
          %839 = vmatpush1.bf16.xpose.msra.mxu0 0
          %840 = vmatprep.mubr.bf16.mxu0 0
          %841 = vmatmul.mubr.bf16.gmra.mrb[0].mxu0 %v803
          %v842 = vpop.f32.mrb[0].mxu0
          %v843 = vadd.f32 %v376, %v842
          %v844 = vpop.f32.mrb[0].mxu0
          %v845 = vpop.f32.mrb[0].mxu0
          %v846 = vpop.f32.mrb[0].mxu0
          %847 = vdwg.mxu0
          %s848 = scalar_lea.vmem [#allocation3], 24
          %v849 = vld [vmem:[%s848] sm:$0xff]
          %v850 = vsel %vm426, %v843, -inf
          %851 = vmax.xlane.f32.xlu0 %v850
          %v852 = vpop.xlane.xlu0 %851
          %v853 = vmax.f32 %v849, %v852
          %v854 = vsub.f32 %v849, %v853
          %v855 = vmul.f32 %v854, 1.442695
          %v856 = vpow.pop %v855
          %858 = vset.pattern.permute.xlu0 0
          %859 = vperm.xlu0 %858, %v853
          %v860 = vpop.permute.xlu0 %859
          %v862 = vsub.f32 %v843, %v860
          %v863 = vmul.f32 %v862, 1.442695
          %v864 = vpow.pop %v863
          %v865 = vld [vmem:[#allocation4] sm:$0xff]
          %867 = vset.pattern.permute.xlu0 0
          %868 = vperm.xlu0 %867, %v856
          %v869 = vpop.permute.xlu0 %868
          %v871 = vmul.f32 %v869, %v865
          %v872 = vsel %vm426, %v864, 0.0
          %873 = vadd.xlane.f32.xlu0 %v872
          %v874 = vpop.xlane.xlu0 %873
          %v875 = vadd.f32 %v871, %v874
          %vm876 = vcmask 1048320
          %877 = vst.msk [vmem:[#allocation4] sm:$0xff] %vm876, %v875
          %v878 = vpack.c.bf16 %v864, %v864
          %879 = vrot.lane.b32.xlu0 %v363, 32
          %v880 = vpop.permute.xlu0 %879
          %v882 = vsel %vm426, %v878, 0
          %v885 = vsel %vm458, %v880, 0
          %887 = vmatprep.subr.bf16.mxu0 0
          %888 = vmatpush1.bf16.msra.mxu0 %v885
          %889 = vmatprep.subr.bf16.mxu0 0
          %890 = vmatpush1.bf16.msra.mxu0 0
          %891 = vmatprep.subr.bf16.mxu0 0
          %892 = vmatpush1.bf16.msra.mxu0 0
          %893 = vmatprep.subr.bf16.mxu0 0
          %894 = vmatpush1.bf16.msra.mxu0 0
          %895 = vmatprep.subr.bf16.mxu0 0
          %896 = vmatpush1.bf16.msra.mxu0 0
          %897 = vmatprep.subr.bf16.mxu0 0
          %898 = vmatpush1.bf16.msra.mxu0 0
          %899 = vmatprep.subr.bf16.mxu0 0
          %900 = vmatpush1.bf16.msra.mxu0 0
          %901 = vmatprep.subr.bf16.mxu0 0
          %902 = vmatpush1.bf16.msra.mxu0 0
          %903 = vmatprep.subr.bf16.mxu0 0
          %904 = vmatpush1.bf16.msra.mxu0 0
          %905 = vmatprep.subr.bf16.mxu0 0
          %906 = vmatpush1.bf16.msra.mxu0 0
          %907 = vmatprep.subr.bf16.mxu0 0
          %908 = vmatpush1.bf16.msra.mxu0 0
          %909 = vmatprep.subr.bf16.mxu0 0
          %910 = vmatpush1.bf16.msra.mxu0 0
          %911 = vmatprep.subr.bf16.mxu0 0
          %912 = vmatpush1.bf16.msra.mxu0 0
          %913 = vmatprep.subr.bf16.mxu0 0
          %914 = vmatpush1.bf16.msra.mxu0 0
          %915 = vmatprep.subr.bf16.mxu0 0
          %916 = vmatpush1.bf16.msra.mxu0 0
          %917 = vmatprep.subr.bf16.mxu0 0
          %918 = vmatpush1.bf16.msra.mxu0 0
          %919 = vmatprep.mubr.bf16.mxu0 0
          %920 = vmatmul.mubr.bf16.gmra.mrb[0].mxu0 %v882
          %v921 = vpop.f32.mrb[0].mxu0
          %v922 = vadd.f32 0.0, %v921
          %v923 = vpop.f32.mrb[0].mxu0
          %v924 = vpop.f32.mrb[0].mxu0
          %v925 = vpop.f32.mrb[0].mxu0
          %926 = vdwg.mxu0
          %v927 = vld [vmem:[#allocation5] sm:$0xff]
          %v928 = vmul.f32 %v869, %v927
          %930 = vrot.lane.b32.xlu0 %v922, 96
          %v931 = vpop.permute.xlu0 %930
          %v933 = vadd.f32 %v928, %v931
          %934 = vst.msk [vmem:[#allocation5] sm:$0xff] %vm876, %v933
          %935 = vst.msk [vmem:[%s848] sm:$0xff] %vm506, %v853
        $region56: #{tpu_custom_call.1} parent=35 // pred_fallthru
          _
        %p936 = scmp.eq.s32.totalorder %s365, 0
        // Predicated region
        $region57: #{tpu_custom_call.1} parent=35 // pred_check
          %p937 = pneg %p936
        $region58: #{tpu_custom_call.1} parent=35 // pred_check_branch
          %939 = sbr.rel (%p937) target = $region60
        $region59: #{tpu_custom_call.1} parent=35 // pred_region
          %v940 = vld [vmem:[#allocation2] sm:$0xf]
          %vm941 = vcmask 261120
          %v943 = vsel %vm941, %v940, 0
          %v946 = vsel %vm941, %v361, 0
          %948 = vmatprep.subr.bf16.mxu0 0
          %949 = vmatpush1.bf16.xpose.msra.mxu0 %v946
          %950 = vmatprep.subr.bf16.mxu0 0
          %951 = vmatpush1.bf16.xpose.msra.mxu0 0
          %952 = vmatprep.subr.bf16.mxu0 0
          %953 = vmatpush1.bf16.xpose.msra.mxu0 0
          %954 = vmatprep.subr.bf16.mxu0 0
          %955 = vmatpush1.bf16.xpose.msra.mxu0 0
          %956 = vmatprep.subr.bf16.mxu0 0
          %957 = vmatpush1.bf16.xpose.msra.mxu0 0
          %958 = vmatprep.subr.bf16.mxu0 0
          %959 = vmatpush1.bf16.xpose.msra.mxu0 0
          %960 = vmatprep.subr.bf16.mxu0 0
          %961 = vmatpush1.bf16.xpose.msra.mxu0 0
          %962 = vmatprep.subr.bf16.mxu0 0
          %963 = vmatpush1.bf16.xpose.msra.mxu0 0
          %964 = vmatprep.subr.bf16.mxu0 0
          %965 = vmatpush1.bf16.xpose.msra.mxu0 0
          %966 = vmatprep.subr.bf16.mxu0 0
          %967 = vmatpush1.bf16.xpose.msra.mxu0 0
          %968 = vmatprep.subr.bf16.mxu0 0
          %969 = vmatpush1.bf16.xpose.msra.mxu0 0
          %970 = vmatprep.subr.bf16.mxu0 0
          %971 = vmatpush1.bf16.xpose.msra.mxu0 0
          %972 = vmatprep.subr.bf16.mxu0 0
          %973 = vmatpush1.bf16.xpose.msra.mxu0 0
          %974 = vmatprep.subr.bf16.mxu0 0
          %975 = vmatpush1.bf16.xpose.msra.mxu0 0
          %976 = vmatprep.subr.bf16.mxu0 0
          %977 = vmatpush1.bf16.xpose.msra.mxu0 0
          %978 = vmatprep.subr.bf16.mxu0 0
          %979 = vmatpush1.bf16.xpose.msra.mxu0 0
          %980 = vmatprep.mubr.bf16.mxu0 0
          %981 = vmatmul.mubr.bf16.gmra.mrb[0].mxu0 %v943
          %v982 = vpop.f32.mrb[0].mxu0
          %v983 = vadd.f32 0.0, %v982
          %v984 = vpop.f32.mrb[0].mxu0
          %v985 = vpop.f32.mrb[0].mxu0
          %v986 = vpop.f32.mrb[0].mxu0
          %987 = vdwg.mxu0
          %v988 = vld [vmem:[#allocation3] sm:$0xff]
          %vm989 = vcmask 64512
          %v990 = vsel %vm989, %v983, -inf
          %991 = vmax.xlane.f32.xlu0 %v990
          %v992 = vpop.xlane.xlu0 %991
          %v993 = vmax.f32 %v988, %v992
          %v994 = vsub.f32 %v988, %v993
          %v995 = vmul.f32 %v994, 1.442695
          %v996 = vpow.pop %v995
          %998 = vset.pattern.permute.xlu0 0
          %999 = vperm.xlu0 %998, %v993
          %v1000 = vpop.permute.xlu0 %999
          %v1002 = vsub.f32 %v983, %v1000
          %v1003 = vmul.f32 %v1002, 1.442695
          %v1004 = vpow.pop %v1003
          %v1005 = vld [vmem:[#allocation4] sm:$0xff]
          %1007 = vset.pattern.permute.xlu0 0
          %1008 = vperm.xlu0 %1007, %v996
          %v1009 = vpop.permute.xlu0 %1008
          %v1011 = vmul.f32 %v1009, %v1005
          %v1012 = vsel %vm989, %v1004, 0.0
          %1013 = vadd.xlane.f32.xlu0 %v1012
          %v1014 = vpop.xlane.xlu0 %1013
          %v1015 = vadd.f32 %v1011, %v1014
          %1016 = vst.msk [vmem:[#allocation4] sm:$0xff] %vm941, %v1015
          %v1017 = vpack.c.bf16 %v1004, %v1004
          %v1019 = vsel %vm989, %v1017, 0
          %vm1021 = vcmask 1043456
          %v1023 = vsel %vm1021, %v363, 0
          %1025 = vmatprep.subr.bf16.mxu0 0
          %1026 = vmatpush1.bf16.msra.mxu0 %v1023
          %1027 = vmatprep.subr.bf16.mxu0 0
          %1028 = vmatpush1.bf16.msra.mxu0 0
          %1029 = vmatprep.subr.bf16.mxu0 0
          %1030 = vmatpush1.bf16.msra.mxu0 0
          %1031 = vmatprep.subr.bf16.mxu0 0
          %1032 = vmatpush1.bf16.msra.mxu0 0
          %1033 = vmatprep.subr.bf16.mxu0 0
          %1034 = vmatpush1.bf16.msra.mxu0 0
          %1035 = vmatprep.subr.bf16.mxu0 0
          %1036 = vmatpush1.bf16.msra.mxu0 0
          %1037 = vmatprep.subr.bf16.mxu0 0
          %1038 = vmatpush1.bf16.msra.mxu0 0
          %1039 = vmatprep.subr.bf16.mxu0 0
          %1040 = vmatpush1.bf16.msra.mxu0 0
          %1041 = vmatprep.subr.bf16.mxu0 0
          %1042 = vmatpush1.bf16.msra.mxu0 0
          %1043 = vmatprep.subr.bf16.mxu0 0
          %1044 = vmatpush1.bf16.msra.mxu0 0
          %1045 = vmatprep.subr.bf16.mxu0 0
          %1046 = vmatpush1.bf16.msra.mxu0 0
          %1047 = vmatprep.subr.bf16.mxu0 0
          %1048 = vmatpush1.bf16.msra.mxu0 0
          %1049 = vmatprep.subr.bf16.mxu0 0
          %1050 = vmatpush1.bf16.msra.mxu0 0
          %1051 = vmatprep.subr.bf16.mxu0 0
          %1052 = vmatpush1.bf16.msra.mxu0 0
          %1053 = vmatprep.subr.bf16.mxu0 0
          %1054 = vmatpush1.bf16.msra.mxu0 0
          %1055 = vmatprep.subr.bf16.mxu0 0
          %1056 = vmatpush1.bf16.msra.mxu0 0
          %1057 = vmatprep.mubr.bf16.mxu0 0
          %1058 = vmatmul.mubr.bf16.gmra.mrb[0].mxu0 %v1019
          %v1059 = vpop.f32.mrb[0].mxu0
          %v1060 = vadd.f32 0.0, %v1059
          %v1061 = vpop.f32.mrb[0].mxu0
          %v1062 = vpop.f32.mrb[0].mxu0
          %v1063 = vpop.f32.mrb[0].mxu0
          %1064 = vdwg.mxu0
          %v1065 = vld [vmem:[#allocation5] sm:$0xff]
          %v1066 = vmul.f32 %v1009, %v1065
          %v1067 = vadd.f32 %v1066, %v1060
          %1068 = vst.msk [vmem:[#allocation5] sm:$0xff] %vm941, %v1067
          %vm1069 = vcmask 7168
          %1070 = vst.msk [vmem:[#allocation3] sm:$0xff] %vm1069, %v993
          %v1071 = vld [vmem:[#allocation2] sm:$0xf]
          %v1073 = vunpack.c.l.b16 %v1071
          %v1074 = vpack.c.b16 %v1073, %v1073
          %1075 = vrot.lane.b32.xlu0 %v1074, 96
          %v1076 = vpop.permute.xlu0 %1075
          %1078 = vrot.lane.b32.xlu0 %v361, 96
          %v1079 = vpop.permute.xlu0 %1078
          %v1081 = vsel %vm941, %v1076, 0
          %v1084 = vsel %vm941, %v1079, 0
          %1086 = vmatprep.subr.bf16.mxu0 0
          %1087 = vmatpush1.bf16.xpose.msra.mxu0 %v1084
          %1088 = vmatprep.subr.bf16.mxu0 0
          %1089 = vmatpush1.bf16.xpose.msra.mxu0 0
          %1090 = vmatprep.subr.bf16.mxu0 0
          %1091 = vmatpush1.bf16.xpose.msra.mxu0 0
          %1092 = vmatprep.subr.bf16.mxu0 0
          %1093 = vmatpush1.bf16.xpose.msra.mxu0 0
          %1094 = vmatprep.subr.bf16.mxu0 0
          %1095 = vmatpush1.bf16.xpose.msra.mxu0 0
          %1096 = vmatprep.subr.bf16.mxu0 0
          %1097 = vmatpush1.bf16.xpose.msra.mxu0 0
          %1098 = vmatprep.subr.bf16.mxu0 0
          %1099 = vmatpush1.bf16.xpose.msra.mxu0 0
          %1100 = vmatprep.subr.bf16.mxu0 0
          %1101 = vmatpush1.bf16.xpose.msra.mxu0 0
          %1102 = vmatprep.subr.bf16.mxu0 0
          %1103 = vmatpush1.bf16.xpose.msra.mxu0 0
          %1104 = vmatprep.subr.bf16.mxu0 0
          %1105 = vmatpush1.bf16.xpose.msra.mxu0 0
          %1106 = vmatprep.subr.bf16.mxu0 0
          %1107 = vmatpush1.bf16.xpose.msra.mxu0 0
          %1108 = vmatprep.subr.bf16.mxu0 0
          %1109 = vmatpush1.bf16.xpose.msra.mxu0 0
          %1110 = vmatprep.subr.bf16.mxu0 0
          %1111 = vmatpush1.bf16.xpose.msra.mxu0 0
          %1112 = vmatprep.subr.bf16.mxu0 0
          %1113 = vmatpush1.bf16.xpose.msra.mxu0 0
          %1114 = vmatprep.subr.bf16.mxu0 0
          %1115 = vmatpush1.bf16.xpose.msra.mxu0 0
          %1116 = vmatprep.subr.bf16.mxu0 0
          %1117 = vmatpush1.bf16.xpose.msra.mxu0 0
          %1118 = vmatprep.mubr.bf16.mxu0 0
          %1119 = vmatmul.mubr.bf16.gmra.mrb[0].mxu0 %v1081
          %v1120 = vpop.f32.mrb[0].mxu0
          %v1121 = vadd.f32 0.0, %v1120
          %v1122 = vpop.f32.mrb[0].mxu0
          %v1123 = vpop.f32.mrb[0].mxu0
          %v1124 = vpop.f32.mrb[0].mxu0
          %1125 = vdwg.mxu0
          %s1126 = scalar_lea.vmem [#allocation3], 8
          %v1127 = vld [vmem:[%s1126] sm:$0xff]
          %v1128 = vsel %vm989, %v1121, -inf
          %1129 = vmax.xlane.f32.xlu0 %v1128
          %v1130 = vpop.xlane.xlu0 %1129
          %v1131 = vmax.f32 %v1127, %v1130
          %v1132 = vsub.f32 %v1127, %v1131
          %v1133 = vmul.f32 %v1132, 1.442695
          %v1134 = vpow.pop %v1133
          %1136 = vset.pattern.permute.xlu0 0
          %1137 = vperm.xlu0 %1136, %v1131
          %v1138 = vpop.permute.xlu0 %1137
          %v1140 = vsub.f32 %v1121, %v1138
          %v1141 = vmul.f32 %v1140, 1.442695
          %v1142 = vpow.pop %v1141
          %v1143 = vld [vmem:[#allocation4] sm:$0xff]
          %1145 = vset.pattern.permute.xlu0 0
          %1146 = vperm.xlu0 %1145, %v1134
          %v1147 = vpop.permute.xlu0 %1146
          %v1149 = vmul.f32 %v1147, %v1143
          %v1150 = vsel %vm989, %v1142, 0.0
          %1151 = vadd.xlane.f32.xlu0 %v1150
          %v1152 = vpop.xlane.xlu0 %1151
          %v1153 = vadd.f32 %v1149, %v1152
          %vm1154 = vcmask 523520
          %1155 = vst.msk [vmem:[#allocation4] sm:$0xff] %vm1154, %v1153
          %v1156 = vpack.c.bf16 %v1142, %v1142
          %1158 = vrot.lane.b32.xlu0 %v363, 96
          %v1159 = vpop.permute.xlu0 %1158
          %v1161 = vsel %vm989, %v1156, 0
          %v1164 = vsel %vm1021, %v1159, 0
          %1166 = vmatprep.subr.bf16.mxu0 0
          %1167 = vmatpush1.bf16.msra.mxu0 %v1164
          %1168 = vmatprep.subr.bf16.mxu0 0
          %1169 = vmatpush1.bf16.msra.mxu0 0
          %1170 = vmatprep.subr.bf16.mxu0 0
          %1171 = vmatpush1.bf16.msra.mxu0 0
          %1172 = vmatprep.subr.bf16.mxu0 0
          %1173 = vmatpush1.bf16.msra.mxu0 0
          %1174 = vmatprep.subr.bf16.mxu0 0
          %1175 = vmatpush1.bf16.msra.mxu0 0
          %1176 = vmatprep.subr.bf16.mxu0 0
          %1177 = vmatpush1.bf16.msra.mxu0 0
          %1178 = vmatprep.subr.bf16.mxu0 0
          %1179 = vmatpush1.bf16.msra.mxu0 0
          %1180 = vmatprep.subr.bf16.mxu0 0
          %1181 = vmatpush1.bf16.msra.mxu0 0
          %1182 = vmatprep.subr.bf16.mxu0 0
          %1183 = vmatpush1.bf16.msra.mxu0 0
          %1184 = vmatprep.subr.bf16.mxu0 0
          %1185 = vmatpush1.bf16.msra.mxu0 0
          %1186 = vmatprep.subr.bf16.mxu0 0
          %1187 = vmatpush1.bf16.msra.mxu0 0
          %1188 = vmatprep.subr.bf16.mxu0 0
          %1189 = vmatpush1.bf16.msra.mxu0 0
          %1190 = vmatprep.subr.bf16.mxu0 0
          %1191 = vmatpush1.bf16.msra.mxu0 0
          %1192 = vmatprep.subr.bf16.mxu0 0
          %1193 = vmatpush1.bf16.msra.mxu0 0
          %1194 = vmatprep.subr.bf16.mxu0 0
          %1195 = vmatpush1.bf16.msra.mxu0 0
          %1196 = vmatprep.subr.bf16.mxu0 0
          %1197 = vmatpush1.bf16.msra.mxu0 0
          %1198 = vmatprep.mubr.bf16.mxu0 0
          %1199 = vmatmul.mubr.bf16.gmra.mrb[0].mxu0 %v1161
          %v1200 = vpop.f32.mrb[0].mxu0
          %v1201 = vadd.f32 0.0, %v1200
          %v1202 = vpop.f32.mrb[0].mxu0
          %v1203 = vpop.f32.mrb[0].mxu0
          %v1204 = vpop.f32.mrb[0].mxu0
          %1205 = vdwg.mxu0
          %v1206 = vld [vmem:[#allocation5] sm:$0xff]
          %v1207 = vmul.f32 %v1147, %v1206
          %1209 = vrot.lane.b32.xlu0 %v1201, 32
          %v1210 = vpop.permute.xlu0 %1209
          %v1212 = vadd.f32 %v1207, %v1210
          %1213 = vst.msk [vmem:[#allocation5] sm:$0xff] %vm1154, %v1212
          %1214 = vst.msk [vmem:[%s1126] sm:$0xff] %vm1069, %v1131
          %v1215 = vld [vmem:[#allocation2] sm:$0xf]
          %v1217 = vunpack.c.l.b16 %v1215
          %v1218 = vpack.c.b16 %v1217, %v1217
          %1219 = vrot.lane.b32.xlu0 %v1218, 64
          %v1220 = vpop.permute.xlu0 %1219
          %1221 = vrot.lane.b32.xlu0 %v361, 64
          %v1222 = vpop.permute.xlu0 %1221
          %v1224 = vsel %vm941, %v1220, 0
          %v1227 = vsel %vm941, %v1222, 0
          %1229 = vmatprep.subr.bf16.mxu0 0
          %1230 = vmatpush1.bf16.xpose.msra.mxu0 %v1227
          %1231 = vmatprep.subr.bf16.mxu0 0
          %1232 = vmatpush1.bf16.xpose.msra.mxu0 0
          %1233 = vmatprep.subr.bf16.mxu0 0
          %1234 = vmatpush1.bf16.xpose.msra.mxu0 0
          %1235 = vmatprep.subr.bf16.mxu0 0
          %1236 = vmatpush1.bf16.xpose.msra.mxu0 0
          %1237 = vmatprep.subr.bf16.mxu0 0
          %1238 = vmatpush1.bf16.xpose.msra.mxu0 0
          %1239 = vmatprep.subr.bf16.mxu0 0
          %1240 = vmatpush1.bf16.xpose.msra.mxu0 0
          %1241 = vmatprep.subr.bf16.mxu0 0
          %1242 = vmatpush1.bf16.xpose.msra.mxu0 0
          %1243 = vmatprep.subr.bf16.mxu0 0
          %1244 = vmatpush1.bf16.xpose.msra.mxu0 0
          %1245 = vmatprep.subr.bf16.mxu0 0
          %1246 = vmatpush1.bf16.xpose.msra.mxu0 0
          %1247 = vmatprep.subr.bf16.mxu0 0
          %1248 = vmatpush1.bf16.xpose.msra.mxu0 0
          %1249 = vmatprep.subr.bf16.mxu0 0
          %1250 = vmatpush1.bf16.xpose.msra.mxu0 0
          %1251 = vmatprep.subr.bf16.mxu0 0
          %1252 = vmatpush1.bf16.xpose.msra.mxu0 0
          %1253 = vmatprep.subr.bf16.mxu0 0
          %1254 = vmatpush1.bf16.xpose.msra.mxu0 0
          %1255 = vmatprep.subr.bf16.mxu0 0
          %1256 = vmatpush1.bf16.xpose.msra.mxu0 0
          %1257 = vmatprep.subr.bf16.mxu0 0
          %1258 = vmatpush1.bf16.xpose.msra.mxu0 0
          %1259 = vmatprep.subr.bf16.mxu0 0
          %1260 = vmatpush1.bf16.xpose.msra.mxu0 0
          %1261 = vmatprep.mubr.bf16.mxu0 0
          %1262 = vmatmul.mubr.bf16.gmra.mrb[0].mxu0 %v1224
          %v1263 = vpop.f32.mrb[0].mxu0
          %v1264 = vadd.f32 0.0, %v1263
          %v1265 = vpop.f32.mrb[0].mxu0
          %v1266 = vpop.f32.mrb[0].mxu0
          %v1267 = vpop.f32.mrb[0].mxu0
          %1268 = vdwg.mxu0
          %s1269 = scalar_lea.vmem [#allocation3], 16
          %v1270 = vld [vmem:[%s1269] sm:$0xff]
          %v1271 = vsel %vm989, %v1264, -inf
          %1272 = vmax.xlane.f32.xlu0 %v1271
          %v1273 = vpop.xlane.xlu0 %1272
          %v1274 = vmax.f32 %v1270, %v1273
          %v1275 = vsub.f32 %v1270, %v1274
          %v1276 = vmul.f32 %v1275, 1.442695
          %v1277 = vpow.pop %v1276
          %1279 = vset.pattern.permute.xlu0 0
          %1280 = vperm.xlu0 %1279, %v1274
          %v1281 = vpop.permute.xlu0 %1280
          %v1283 = vsub.f32 %v1264, %v1281
          %v1284 = vmul.f32 %v1283, 1.442695
          %v1285 = vpow.pop %v1284
          %v1286 = vld [vmem:[#allocation4] sm:$0xff]
          %1288 = vset.pattern.permute.xlu0 0
          %1289 = vperm.xlu0 %1288, %v1277
          %v1290 = vpop.permute.xlu0 %1289
          %v1292 = vmul.f32 %v1290, %v1286
          %v1293 = vsel %vm989, %v1285, 0.0
          %1294 = vadd.xlane.f32.xlu0 %v1293
          %v1295 = vpop.xlane.xlu0 %1294
          %v1296 = vadd.f32 %v1292, %v1295
          %vm1297 = vcmask 785920
          %1298 = vst.msk [vmem:[#allocation4] sm:$0xff] %vm1297, %v1296
          %v1299 = vpack.c.bf16 %v1285, %v1285
          %1300 = vrot.lane.b32.xlu0 %v363, 64
          %v1301 = vpop.permute.xlu0 %1300
          %v1303 = vsel %vm989, %v1299, 0
          %v1306 = vsel %vm1021, %v1301, 0
          %1308 = vmatprep.subr.bf16.mxu0 0
          %1309 = vmatpush1.bf16.msra.mxu0 %v1306
          %1310 = vmatprep.subr.bf16.mxu0 0
          %1311 = vmatpush1.bf16.msra.mxu0 0
          %1312 = vmatprep.subr.bf16.mxu0 0
          %1313 = vmatpush1.bf16.msra.mxu0 0
          %1314 = vmatprep.subr.bf16.mxu0 0
          %1315 = vmatpush1.bf16.msra.mxu0 0
          %1316 = vmatprep.subr.bf16.mxu0 0
          %1317 = vmatpush1.bf16.msra.mxu0 0
          %1318 = vmatprep.subr.bf16.mxu0 0
          %1319 = vmatpush1.bf16.msra.mxu0 0
          %1320 = vmatprep.subr.bf16.mxu0 0
          %1321 = vmatpush1.bf16.msra.mxu0 0
          %1322 = vmatprep.subr.bf16.mxu0 0
          %1323 = vmatpush1.bf16.msra.mxu0 0
          %1324 = vmatprep.subr.bf16.mxu0 0
          %1325 = vmatpush1.bf16.msra.mxu0 0
          %1326 = vmatprep.subr.bf16.mxu0 0
          %1327 = vmatpush1.bf16.msra.mxu0 0
          %1328 = vmatprep.subr.bf16.mxu0 0
          %1329 = vmatpush1.bf16.msra.mxu0 0
          %1330 = vmatprep.subr.bf16.mxu0 0
          %1331 = vmatpush1.bf16.msra.mxu0 0
          %1332 = vmatprep.subr.bf16.mxu0 0
          %1333 = vmatpush1.bf16.msra.mxu0 0
          %1334 = vmatprep.subr.bf16.mxu0 0
          %1335 = vmatpush1.bf16.msra.mxu0 0
          %1336 = vmatprep.subr.bf16.mxu0 0
          %1337 = vmatpush1.bf16.msra.mxu0 0
          %1338 = vmatprep.subr.bf16.mxu0 0
          %1339 = vmatpush1.bf16.msra.mxu0 0
          %1340 = vmatprep.mubr.bf16.mxu0 0
          %1341 = vmatmul.mubr.bf16.gmra.mrb[0].mxu0 %v1303
          %v1342 = vpop.f32.mrb[0].mxu0
          %v1343 = vadd.f32 0.0, %v1342
          %v1344 = vpop.f32.mrb[0].mxu0
          %v1345 = vpop.f32.mrb[0].mxu0
          %v1346 = vpop.f32.mrb[0].mxu0
          %1347 = vdwg.mxu0
          %v1348 = vld [vmem:[#allocation5] sm:$0xff]
          %v1349 = vmul.f32 %v1290, %v1348
          %1351 = vrot.lane.b32.xlu0 %v1343, 64
          %v1352 = vpop.permute.xlu0 %1351
          %v1354 = vadd.f32 %v1349, %v1352
          %1355 = vst.msk [vmem:[#allocation5] sm:$0xff] %vm1297, %v1354
          %1356 = vst.msk [vmem:[%s1269] sm:$0xff] %vm1069, %v1274
          %v1357 = vld [vmem:[#allocation2] sm:$0xf]
          %v1359 = vunpack.c.l.b16 %v1357
          %v1360 = vpack.c.b16 %v1359, %v1359
          %1361 = vrot.lane.b32.xlu0 %v1360, 32
          %v1362 = vpop.permute.xlu0 %1361
          %1363 = vrot.lane.b32.xlu0 %v361, 32
          %v1364 = vpop.permute.xlu0 %1363
          %v1366 = vsel %vm941, %v1362, 0
          %v1369 = vsel %vm941, %v1364, 0
          %1371 = vmatprep.subr.bf16.mxu0 0
          %1372 = vmatpush1.bf16.xpose.msra.mxu0 %v1369
          %1373 = vmatprep.subr.bf16.mxu0 0
          %1374 = vmatpush1.bf16.xpose.msra.mxu0 0
          %1375 = vmatprep.subr.bf16.mxu0 0
          %1376 = vmatpush1.bf16.xpose.msra.mxu0 0
          %1377 = vmatprep.subr.bf16.mxu0 0
          %1378 = vmatpush1.bf16.xpose.msra.mxu0 0
          %1379 = vmatprep.subr.bf16.mxu0 0
          %1380 = vmatpush1.bf16.xpose.msra.mxu0 0
          %1381 = vmatprep.subr.bf16.mxu0 0
          %1382 = vmatpush1.bf16.xpose.msra.mxu0 0
          %1383 = vmatprep.subr.bf16.mxu0 0
          %1384 = vmatpush1.bf16.xpose.msra.mxu0 0
          %1385 = vmatprep.subr.bf16.mxu0 0
          %1386 = vmatpush1.bf16.xpose.msra.mxu0 0
          %1387 = vmatprep.subr.bf16.mxu0 0
          %1388 = vmatpush1.bf16.xpose.msra.mxu0 0
          %1389 = vmatprep.subr.bf16.mxu0 0
          %1390 = vmatpush1.bf16.xpose.msra.mxu0 0
          %1391 = vmatprep.subr.bf16.mxu0 0
          %1392 = vmatpush1.bf16.xpose.msra.mxu0 0
          %1393 = vmatprep.subr.bf16.mxu0 0
          %1394 = vmatpush1.bf16.xpose.msra.mxu0 0
          %1395 = vmatprep.subr.bf16.mxu0 0
          %1396 = vmatpush1.bf16.xpose.msra.mxu0 0
          %1397 = vmatprep.subr.bf16.mxu0 0
          %1398 = vmatpush1.bf16.xpose.msra.mxu0 0
          %1399 = vmatprep.subr.bf16.mxu0 0
          %1400 = vmatpush1.bf16.xpose.msra.mxu0 0
          %1401 = vmatprep.subr.bf16.mxu0 0
          %1402 = vmatpush1.bf16.xpose.msra.mxu0 0
          %1403 = vmatprep.mubr.bf16.mxu0 0
          %1404 = vmatmul.mubr.bf16.gmra.mrb[0].mxu0 %v1366
          %v1405 = vpop.f32.mrb[0].mxu0
          %v1406 = vadd.f32 0.0, %v1405
          %v1407 = vpop.f32.mrb[0].mxu0
          %v1408 = vpop.f32.mrb[0].mxu0
          %v1409 = vpop.f32.mrb[0].mxu0
          %1410 = vdwg.mxu0
          %s1411 = scalar_lea.vmem [#allocation3], 24
          %v1412 = vld [vmem:[%s1411] sm:$0xff]
          %v1413 = vsel %vm989, %v1406, -inf
          %1414 = vmax.xlane.f32.xlu0 %v1413
          %v1415 = vpop.xlane.xlu0 %1414
          %v1416 = vmax.f32 %v1412, %v1415
          %v1417 = vsub.f32 %v1412, %v1416
          %v1418 = vmul.f32 %v1417, 1.442695
          %v1419 = vpow.pop %v1418
          %1421 = vset.pattern.permute.xlu0 0
          %1422 = vperm.xlu0 %1421, %v1416
          %v1423 = vpop.permute.xlu0 %1422
          %v1425 = vsub.f32 %v1406, %v1423
          %v1426 = vmul.f32 %v1425, 1.442695
          %v1427 = vpow.pop %v1426
          %v1428 = vld [vmem:[#allocation4] sm:$0xff]
          %1430 = vset.pattern.permute.xlu0 0
          %1431 = vperm.xlu0 %1430, %v1419
          %v1432 = vpop.permute.xlu0 %1431
          %v1434 = vmul.f32 %v1432, %v1428
          %v1435 = vsel %vm989, %v1427, 0.0
          %1436 = vadd.xlane.f32.xlu0 %v1435
          %v1437 = vpop.xlane.xlu0 %1436
          %v1438 = vadd.f32 %v1434, %v1437
          %vm1439 = vcmask 1048320
          %1440 = vst.msk [vmem:[#allocation4] sm:$0xff] %vm1439, %v1438
          %v1441 = vpack.c.bf16 %v1427, %v1427
          %1442 = vrot.lane.b32.xlu0 %v363, 32
          %v1443 = vpop.permute.xlu0 %1442
          %v1445 = vsel %vm989, %v1441, 0
          %v1448 = vsel %vm1021, %v1443, 0
          %1450 = vmatprep.subr.bf16.mxu0 0
          %1451 = vmatpush1.bf16.msra.mxu0 %v1448
          %1452 = vmatprep.subr.bf16.mxu0 0
          %1453 = vmatpush1.bf16.msra.mxu0 0
          %1454 = vmatprep.subr.bf16.mxu0 0
          %1455 = vmatpush1.bf16.msra.mxu0 0
          %1456 = vmatprep.subr.bf16.mxu0 0
          %1457 = vmatpush1.bf16.msra.mxu0 0
          %1458 = vmatprep.subr.bf16.mxu0 0
          %1459 = vmatpush1.bf16.msra.mxu0 0
          %1460 = vmatprep.subr.bf16.mxu0 0
          %1461 = vmatpush1.bf16.msra.mxu0 0
          %1462 = vmatprep.subr.bf16.mxu0 0
          %1463 = vmatpush1.bf16.msra.mxu0 0
          %1464 = vmatprep.subr.bf16.mxu0 0
          %1465 = vmatpush1.bf16.msra.mxu0 0
          %1466 = vmatprep.subr.bf16.mxu0 0
          %1467 = vmatpush1.bf16.msra.mxu0 0
          %1468 = vmatprep.subr.bf16.mxu0 0
          %1469 = vmatpush1.bf16.msra.mxu0 0
          %1470 = vmatprep.subr.bf16.mxu0 0
          %1471 = vmatpush1.bf16.msra.mxu0 0
          %1472 = vmatprep.subr.bf16.mxu0 0
          %1473 = vmatpush1.bf16.msra.mxu0 0
          %1474 = vmatprep.subr.bf16.mxu0 0
          %1475 = vmatpush1.bf16.msra.mxu0 0
          %1476 = vmatprep.subr.bf16.mxu0 0
          %1477 = vmatpush1.bf16.msra.mxu0 0
          %1478 = vmatprep.subr.bf16.mxu0 0
          %1479 = vmatpush1.bf16.msra.mxu0 0
          %1480 = vmatprep.subr.bf16.mxu0 0
          %1481 = vmatpush1.bf16.msra.mxu0 0
          %1482 = vmatprep.mubr.bf16.mxu0 0
          %1483 = vmatmul.mubr.bf16.gmra.mrb[0].mxu0 %v1445
          %v1484 = vpop.f32.mrb[0].mxu0
          %v1485 = vadd.f32 0.0, %v1484
          %v1486 = vpop.f32.mrb[0].mxu0
          %v1487 = vpop.f32.mrb[0].mxu0
          %v1488 = vpop.f32.mrb[0].mxu0
          %1489 = vdwg.mxu0
          %v1490 = vld [vmem:[#allocation5] sm:$0xff]
          %v1491 = vmul.f32 %v1432, %v1490
          %1493 = vrot.lane.b32.xlu0 %v1485, 96
          %v1494 = vpop.permute.xlu0 %1493
          %v1496 = vadd.f32 %v1491, %v1494
          %1497 = vst.msk [vmem:[#allocation5] sm:$0xff] %vm1439, %v1496
          %1498 = vst.msk [vmem:[%s1411] sm:$0xff] %vm1069, %v1416
        $region60: #{tpu_custom_call.1} parent=35 // pred_fallthru
          _
        // Predicated region
        $region61: #{tpu_custom_call.1} parent=35 // pred_check
          %p1499 = pneg %p345
        $region62: #{tpu_custom_call.1} parent=35 // pred_check_branch
          %1501 = sbr.rel (%p1499) target = $region64
        $region63: #{tpu_custom_call.1} parent=35 // pred_region
          %v1502 = vld [vmem:[#allocation4] sm:$0xff]
          %v1503 = vrcp.pop %v1502
          %v1504 = vld [vmem:[#allocation5] sm:$0xff]
          %v1505 = vmul.f32 %v1504, %v1503
          %1506 = vst [vmem:[%s337] sm:$0xff] %v1505
        $region64: #{tpu_custom_call.1} parent=35 // pred_fallthru
          _
        %s1507 = sand.u32 %s170, 1
        %s1508 = scalar_lea.sflag [#allocation10], %s1507
        %s1509 = sand.u32 %s170, 1
        %s1510 = smul.addr %s1509, 8
        %s1511 = scalar_lea.vmem [#allocation14], %s1510
        // Predicated region
        $region65: #{tpu_custom_call.1} parent=35 // pred_check
          %p1512 = pneg %p180
        $region66: #{tpu_custom_call.1} parent=35 // pred_check_branch
          %1514 = sbr.rel (%p1512) target = $region68
        $region67: #{tpu_custom_call.1} parent=35 // pred_region
          %s1516 = ssub.s32 128, 128
          %1517 = vsyncadd %s1508, %s1516
          %s1518 = sadd.s32 %s35, %s34
          %s1519 = smul.addr %s1518, 128
          %s1520 = scalar_lea.hbm %s5, %s1519
          %s1522 = sshll.u32 %s1511, 4
          %s1523 = int_to_ptr.vmem [resolvable:$true] %s1522
          %1525 = dma.vmem_to_hbm [thread:$0]  %s1523, 128, %s1520, %s1508
        $region68: #{tpu_custom_call.1} parent=35 // pred_fallthru
          _
      $region36: #{tpu_custom_call.1} parent=5 // pred_fallthru
        _
      %p1526 = scmp.le.s32.totalorder 2, %s24
      // Predicated region
      $region69: #{tpu_custom_call.1} parent=5 // pred_check
        %p1527 = pneg %p1526
      $region70: #{tpu_custom_call.1} parent=5 // pred_check_branch
        %1529 = sbr.rel (%p1527) target = $region72
      $region71: #{tpu_custom_call.1} parent=5 // pred_region
        %s1530 = ssub.s32 %s24, 2
        // Predicated region
        $region73: #{tpu_custom_call.1} parent=71 // pred_check
          %p1531 = pneg %p186
        $region74: #{tpu_custom_call.1} parent=71 // pred_check_branch
          %1533 = sbr.rel (%p1531) target = $region76
        $region75: #{tpu_custom_call.1} parent=71 // pred_region
          %s1534 = sand.u32 %s171, 1
          %s1535 = scalar_lea.sflag [#allocation10], %s1534
          %s1536 = sand.u32 %s171, 1
          %s1537 = smul.addr %s1536, 8
          %s1538 = scalar_lea.vmem [#allocation14], %s1537
          %1539 = dma.done %s1535, 128
        $region76: #{tpu_custom_call.1} parent=71 // pred_fallthru
          _
      $region72: #{tpu_custom_call.1} parent=5 // pred_fallthru
        _
    $region6: #{tpu_custom_call.1} parent=1 // loop_footer
      %s28 = sadd.s32 1, %s24
    $region7: #{tpu_custom_call.1} parent=1 // loop_footer_branch
      %23 = sbr.rel target = $region3
    $region8: #{tpu_custom_call.1} parent=1 // loop_exit
      _
    %1540 = vsyncpa [#allocation9], 1
    %s1541 = scalar_lea.sflag [#allocation9], 1
    %1542 = vsyncpa %s1541, 1
    %1543 = vsyncpa [#allocation12], 1
    %s1544 = scalar_lea.sflag [#allocation12], 1
    %1545 = vsyncpa %s1544, 1
    %1546 = vsyncpa [#allocation10], 1
    %s1547 = scalar_lea.sflag [#allocation10], 1
    %1548 = vsyncpa %s1547, 1

</llo_original>
